<compile_context>
chip_gen: v7x
topology: tpu7x:2x2x1
jax: 0.10.0
libtpu: 0.0.40
codegen_flags: <defaults>
</compile_context>

<pallas_src>
import functools
import math

import jax
import jax.numpy as jnp
from jax.experimental import pallas as pl
from jax.experimental.pallas import tpu as pltpu


# ----------------------------------------------------------------------------
# Pallas kernel: 3x3 stride-1 "same" conv over (optionally several channel-
# concatenated) inputs, optional fused nearest-2x upsample along H, bias,
# optional ReLU, optional fused residual add.  bf16 matmuls, f32 epilogue.
# ----------------------------------------------------------------------------
def _conv3x3_kernel(*refs, cins, H, W, upsample_h, apply_relu, has_residual):
    n_in = len(cins)
    x_refs = refs[:n_in]
    w_refs = refs[n_in:2 * n_in]
    b_ref = refs[2 * n_in]
    pos = 2 * n_in + 1
    if has_residual:
        r_ref = refs[pos]
        pos += 1
    else:
        r_ref = None
    o_ref = refs[pos]
    pad_ref = refs[pos + 1]                        # VMEM (H+2, W+2, Cmax) bf16

    cout = o_ref.shape[-1]
    cmax = pad_ref.shape[-1]

    # Zero the 1-pixel halo border every grid step (cheap; safe under
    # megacore "parallel" partitioning).  Interiors are overwritten below.
    zero_row = jnp.zeros((1, W + 2, cmax), pad_ref.dtype)
    zero_col = jnp.zeros((H + 2, 1, cmax), pad_ref.dtype)
    pad_ref[pl.ds(0, 1), pl.ds(0, W + 2), pl.ds(0, cmax)] = zero_row
    pad_ref[pl.ds(H + 1, 1), pl.ds(0, W + 2), pl.ds(0, cmax)] = zero_row
    pad_ref[pl.ds(0, H + 2), pl.ds(0, 1), pl.ds(0, cmax)] = zero_col
    pad_ref[pl.ds(0, H + 2), pl.ds(W + 1, 1), pl.ds(0, cmax)] = zero_col

    acc = jnp.zeros((H, W, cout), jnp.float32)
    for k in range(n_in):
        cin = cins[k]
        x = x_refs[k][0]                                     # (Hin, W, cin) bf16
        if upsample_h:
            hin = x.shape[0]
            # Nearest 2x along H: leading-dim broadcast + leading-dim reshape
            # only (last two dims untouched -> cheap & always lowerable).
            x = jnp.broadcast_to(x[:, None, :, :], (hin, 2, W, cin))
            x = x.reshape(2 * hin, W, cin)
        # Write the interior of the zero-bordered scratch tile.
        pad_ref[pl.ds(1, H), pl.ds(1, W), pl.ds(0, cin)] = x

        # conv(concat(x_0, x_1)) == conv_0(x_0) + conv_1(x_1): accumulate the
        # taps of every input part into the same f32 accumulator.
        for dx in range(3):
            # One sublane-shifted slab per dx, re-used across the 3 dy taps.
            s_dx = pad_ref[pl.ds(0, H + 2), pl.ds(dx, W), pl.ds(0, cin)]
            for dy in range(3):
                slab = s_dx[dy:dy + H]                       # (H, W, cin) bf16
                acc = acc + jax.lax.dot_general(
                    slab, w_refs[k][dy, dx],
                    dimension_numbers=(((2,), (0,)), ((), ())),
                    preferred_element_type=jnp.float32)

    acc = acc + b_ref[0][None, None, :].astype(jnp.float32)
    if apply_relu:
        acc = jnp.maximum(acc, 0.0)
    if r_ref is not None:                                    # fused residual add
        acc = acc + r_ref[0].astype(jnp.float32)
    o_ref[...] = acc[None].astype(o_ref.dtype)


def conv3x3_multi(parts, weights, bias, *, relu, upsample_h=False,
                  residual=None, out_dtype=jnp.bfloat16):
    """ConvBlock(sum(Cin_k), Cout, 3, 1, 1) applied to the channel-concat of
    `parts` (concat fused away), optional fused nearest-2x upsample of the
    inputs (H in-kernel, W pre-doubled by caller) and fused residual add."""
    # Residual add is only used by the shortcut conv (activation='none'), so
    # the relu-before-add question never arises.
    assert not (relu and residual is not None)

    N, Hin, W = parts[0].shape[0], parts[0].shape[1], parts[0].shape[2]
    H = 2 * Hin if upsample_h else Hin
    cins = tuple(int(p.shape[-1]) for p in parts)
    cout = int(weights[0].shape[-1])
    cmax = max(cins)

    args, in_specs = [], []
    for p, c in zip(parts, cins):
        assert p.shape == (N, Hin, W, c)
        args.append(p.astype(jnp.bfloat16))
        in_specs.append(pl.BlockSpec((1, Hin, W, c), lambda n: (n, 0, 0, 0)))
    for w, c in zip(weights, cins):
        assert w.shape == (3, 3, c, cout)
        args.append(w.astype(jnp.bfloat16))
        in_specs.append(pl.BlockSpec((3, 3, c, cout), lambda n: (0, 0, 0, 0)))
    args.append(bias.astype(jnp.float32).reshape(1, cout))
    in_specs.append(pl.BlockSpec((1, cout), lambda n: (0, 0)))
    if residual is not None:
        assert residual.shape == (N, H, W, cout)
        args.append(residual.astype(jnp.bfloat16))
        in_specs.append(pl.BlockSpec((1, H, W, cout), lambda n: (n, 0, 0, 0)))

    kernel = functools.partial(
        _conv3x3_kernel, cins=cins, H=H, W=W, upsample_h=upsample_h,
        apply_relu=relu, has_residual=residual is not None)

    bytes_accessed = sum(
        math.prod(a.shape) * jnp.dtype(a.dtype).itemsize for a in args)
    bytes_accessed += N * H * W * cout * jnp.dtype(out_dtype).itemsize
    cost = pl.CostEstimate(
        flops=2 * N * H * W * 9 * sum(cins) * cout,
        transcendentals=0,
        bytes_accessed=int(bytes_accessed))

    return pl.pallas_call(
        kernel,
        out_shape=jax.ShapeDtypeStruct((N, H, W, cout), out_dtype),
        grid_spec=pltpu.PrefetchScalarGridSpec(
            num_scalar_prefetch=0,
            grid=(N,),
            in_specs=in_specs,
            out_specs=pl.BlockSpec((1, H, W, cout), lambda n: (n, 0, 0, 0)),
            scratch_shapes=[pltpu.VMEM((H + 2, W + 2, cmax), jnp.bfloat16)]),
        compiler_params=pltpu.CompilerParams(
            dimension_semantics=("parallel",)),
        cost_estimate=cost,
    )(*args)


# ----------------------------------------------------------------------------
# Module building blocks (thin glue around the Pallas conv kernel)
# ----------------------------------------------------------------------------
def upsample_w(x):
    # Nearest 2x along W only (plain JAX, bf16); the H doubling is fused into
    # the consuming conv kernel.
    # TODO(synk): fuse the W doubling (sublane interleave) into the kernel too.
    return jnp.repeat(x, 2, axis=2)


def conv_block_multi(p, parts, *, relu, upsample_h=False, residual=None,
                     out_dtype=jnp.bfloat16):
    """ConvBlock on the (fused) channel-concat of `parts`."""
    w, b = p["w"], p["b"]
    weights, off = [], 0
    for t in parts:
        c = int(t.shape[-1])
        weights.append(w[:, :, off:off + c, :])
        off += c
    assert off == w.shape[2]
    return conv3x3_multi(parts, weights, b, relu=relu, upsample_h=upsample_h,
                         residual=residual, out_dtype=out_dtype)


def res_upsample_block(p, parts):
    """ResUpsampleBlock: conv2(up(conv1(x))) + conv_none(up(x)); the final add
    is fused into the shortcut conv, the concat of `parts` into every conv."""
    out_lo = conv_block_multi(p["conv1"], parts, relu=True)
    out = conv_block_multi(p["conv2"], [upsample_w(out_lo)], relu=True,
                           upsample_h=True)
    parts_up_w = [upsample_w(t) for t in parts]
    return conv_block_multi(p["shortcut"], parts_up_w, relu=False,
                            upsample_h=True, residual=out)


# ----------------------------------------------------------------------------
# Parameter construction (deterministic, mirrors Decoder_UNet.__init__)
# ----------------------------------------------------------------------------
def make_conv_params(key, cin, cout):
    k1, k2 = jax.random.split(key)
    scale = 1.0 / math.sqrt(3 * 3 * cin)
    w = jax.random.normal(k1, (3, 3, cin, cout), jnp.float32) * scale
    b = jax.random.normal(k2, (cout,), jnp.float32) * 0.01
    return {"w": w, "b": b}


def make_res_upsample_params(key, cin, cout):
    ks = jax.random.split(key, 3)
    return {"shortcut": make_conv_params(ks[0], cin, cout),   # activation 'none'
            "conv1": make_conv_params(ks[1], cin, cout),      # relu
            "conv2": make_conv_params(ks[2], cout, cout)}     # relu


def build_decoder_params(key, input_dim, min_filter_num, max_filter_num_image,
                         max_filter_num_pose, downscale_num):
    keys = iter(jax.random.split(key, 64))
    max_filter_num = max(max_filter_num_image, max_filter_num_pose)
    filters, current, compress, concat = [], min_filter_num, min_filter_num, None
    for _ in range(downscale_num - 1):
        next_img = min(current * 2, max_filter_num_image)
        next_pose = min(current * 2, max_filter_num_pose)
        concat = next_img + next_pose
        filters.append((max_filter_num, concat, compress))
        compress = max_filter_num
        current *= 2
    compressor = [make_conv_params(next(keys), f[1], f[0]) for f in filters]
    res_blocks = [make_res_upsample_params(next(keys), f[0] * 2, f[2])
                  for f in filters]
    res_blocks.reverse()
    compressor.reverse()
    first_upsample = make_res_upsample_params(next(keys), concat, max_filter_num)
    conv = make_conv_params(next(keys), min_filter_num, input_dim)   # 'none'
    rgb_mask = make_conv_params(next(keys), min_filter_num, 1)
    depth_mask = make_conv_params(next(keys), min_filter_num, 1)
    # Fuse x-conv + rgb_mask + depth_mask into a single (input_dim+2)-ch conv.
    final = {"w": jnp.concatenate([conv["w"], rgb_mask["w"], depth_mask["w"]],
                                  axis=-1),
             "b": jnp.concatenate([conv["b"], rgb_mask["b"], depth_mask["b"]])}
    return {"first_upsample": first_upsample, "res_blocks": res_blocks,
            "compressor": compressor, "final": final, "input_dim": input_dim}


# ----------------------------------------------------------------------------
# Decoder_UNet.forward (deformable=False)
# ----------------------------------------------------------------------------
def decoder_unet_forward(params, outs_nhwc):
    """`outs_nhwc`: list of per-branch feature lists (shallow -> deep), NHWC."""
    outs = [list(branch) for branch in outs_nhwc]            # mimic list.pop()
    h0 = res_upsample_block(params["first_upsample"],
                            [branch.pop() for branch in outs])
    for i in range(len(params["res_blocks"])):
        compressed = conv_block_multi(params["compressor"][i],
                                      [branch.pop() for branch in outs],
                                      relu=True)
        # torch.cat([compressed, h0], 1) is fused into the res-block convs.
        h0 = res_upsample_block(params["res_blocks"][i], [compressed, h0])
    # TODO(synk): conv2d_offset (deformable=True) branch omitted; default is False.
    d = params["input_dim"]
    y = conv_block_multi(params["final"], [h0], relu=False,
                         out_dtype=jnp.float32)
    x = y[..., 0:d]
    rgb_mask = jax.nn.sigmoid(y[..., d:d + 1])
    depth_mask = jax.nn.sigmoid(y[..., d + 1:d + 2])
    return x, rgb_mask, depth_mask


# ----------------------------------------------------------------------------
# Example run
# ----------------------------------------------------------------------------
if __name__ == "__main__":
    BATCH = 2
    INPUT_DIM = 3
    MIN_F, MAX_F_IMG, MAX_F_POSE, DOWNSCALE = 8, 32, 16, 3
    BASE_SPATIAL = 4          # deepest encoder feature spatial size

    key = jax.random.PRNGKey(0)
    k_params, k_in = jax.random.split(key)
    params = build_decoder_params(k_params, INPUT_DIM, MIN_F, MAX_F_IMG,
                                  MAX_F_POSE, DOWNSCALE)

    # Per-encoder-level channel counts (same recurrence as __init__).
    img_ch, pose_ch, cur = [], [], MIN_F
    for _ in range(DOWNSCALE - 1):
        img_ch.append(min(cur * 2, MAX_F_IMG))
        pose_ch.append(min(cur * 2, MAX_F_POSE))
        cur *= 2

    # forward pops deepest-first: levels [D-2, D-2, D-3, ..., 0]
    pop_levels = [DOWNSCALE - 2] + [DOWNSCALE - 2 - i for i in range(DOWNSCALE - 1)]
    pop_spatials = [BASE_SPATIAL * (2 ** k) for k in range(len(pop_levels))]

    in_keys = iter(jax.random.split(k_in, 2 * len(pop_levels)))
    image_branch_nchw, pose_branch_nchw = [], []
    # Build lists shallow -> deep so .pop() yields deepest first.
    for lvl, sp in list(zip(pop_levels, pop_spatials))[::-1]:
        image_branch_nchw.append(jax.random.normal(
            next(in_keys), (BATCH, img_ch[lvl], sp, sp), jnp.float32))
        pose_branch_nchw.append(jax.random.normal(
            next(in_keys), (BATCH, pose_ch[lvl], sp, sp), jnp.float32))

    to_nhwc = lambda t: jnp.transpose(t, (0, 2, 3, 1))
    outs_nhwc = [[to_nhwc(t) for t in image_branch_nchw],
                 [to_nhwc(t) for t in pose_branch_nchw]]

    x, rgb_mask, depth_mask = decoder_unet_forward(params, outs_nhwc)
    to_nchw = lambda t: jnp.transpose(t, (0, 3, 1, 2))     # back to PyTorch NCHW
    x, rgb_mask, depth_mask = jax.block_until_ready(
        (to_nchw(x), to_nchw(rgb_mask), to_nchw(depth_mask)))

    out_sp = BASE_SPATIAL * (2 ** DOWNSCALE)
    assert x.shape == (BATCH, INPUT_DIM, out_sp, out_sp), x.shape
    assert rgb_mask.shape == (BATCH, 1, out_sp, out_sp), rgb_mask.shape
    assert depth_mask.shape == (BATCH, 1, out_sp, out_sp), depth_mask.shape
    for t in (x, rgb_mask, depth_mask):
        assert bool(jnp.all(jnp.isfinite(t)))
    print("KERNEL_OK")
</pallas_src>

<mosaic_0001>
module attributes {stable_mosaic.version = 11 : i64} {
  func.func @_conv3x3_kernel(%arg0: i32, %arg1: memref<1x4x4x32xbf16, #tpu.memory_space<vmem>>, %arg2: memref<1x4x4x16xbf16, #tpu.memory_space<vmem>>, %arg3: memref<3x3x32x32xbf16, #tpu.memory_space<vmem>>, %arg4: memref<3x3x16x32xbf16, #tpu.memory_space<vmem>>, %arg5: memref<1x32xf32, #tpu.memory_space<vmem>>, %arg6: memref<1x4x4x32xbf16, #tpu.memory_space<vmem>>, %arg7: memref<6x6x32xbf16, #tpu.memory_space<vmem>>) attributes {dimension_semantics = [#tpu.dimension_semantics<parallel>], iteration_bounds = array<i64: 2>, scalar_prefetch = 0 : i64, scratch_operands = 1 : i64, tpu.core_type = #tpu.core_type<tc>, window_params = [{transform_indices = @transform_0, window_bounds = array<i64: 1, 4, 4, 32>}, {transform_indices = @transform_1, window_bounds = array<i64: 1, 4, 4, 16>}, {pipeline_mode = #tpu.pipeline_mode<synchronous>, transform_indices = @transform_2, window_bounds = array<i64: 3, 3, 32, 32>}, {pipeline_mode = #tpu.pipeline_mode<synchronous>, transform_indices = @transform_3, window_bounds = array<i64: 3, 3, 16, 32>}, {pipeline_mode = #tpu.pipeline_mode<synchronous>, transform_indices = @transform_4, window_bounds = array<i64: 1, 32>}, {transform_indices = @transform_5, window_bounds = array<i64: 1, 4, 4, 32>}]} {
    %cst = arith.constant 0.000000e+00 : bf16
    %0 = vector.broadcast %cst : bf16 to vector<1x6x32xbf16>
    %cst_0 = arith.constant 0.000000e+00 : bf16
    %1 = vector.broadcast %cst_0 : bf16 to vector<6x1x32xbf16>
    %c0 = arith.constant 0 : index
    %c0_1 = arith.constant 0 : index
    %c0_2 = arith.constant 0 : index
    %2 = vector.load %arg7[%c0, %c0_1, %c0_2] : memref<6x6x32xbf16, #tpu.memory_space<vmem>>, vector<1x6x32xbf16>
    tpu.vector_store %arg7[%c0, %c0_1, %c0_2], %0 {strides = array<i32>} : memref<6x6x32xbf16, #tpu.memory_space<vmem>>, vector<1x6x32xbf16>,
    %c5 = arith.constant 5 : index
    %c0_3 = arith.constant 0 : index
    %c0_4 = arith.constant 0 : index
    %3 = vector.load %arg7[%c5, %c0_3, %c0_4] : memref<6x6x32xbf16, #tpu.memory_space<vmem>>, vector<1x6x32xbf16>
    tpu.vector_store %arg7[%c5, %c0_3, %c0_4], %0 {strides = array<i32>} : memref<6x6x32xbf16, #tpu.memory_space<vmem>>, vector<1x6x32xbf16>,
    %c0_5 = arith.constant 0 : index
    %c0_6 = arith.constant 0 : index
    %c0_7 = arith.constant 0 : index
    %4 = vector.load %arg7[%c0_5, %c0_6, %c0_7] : memref<6x6x32xbf16, #tpu.memory_space<vmem>>, vector<6x1x32xbf16>
    tpu.vector_store %arg7[%c0_5, %c0_6, %c0_7], %1 {strides = array<i32>} : memref<6x6x32xbf16, #tpu.memory_space<vmem>>, vector<6x1x32xbf16>,
    %c0_8 = arith.constant 0 : index
    %c5_9 = arith.constant 5 : index
    %c0_10 = arith.constant 0 : index
    %5 = vector.load %arg7[%c0_8, %c5_9, %c0_10] : memref<6x6x32xbf16, #tpu.memory_space<vmem>>, vector<6x1x32xbf16>
    tpu.vector_store %arg7[%c0_8, %c5_9, %c0_10], %1 {strides = array<i32>} : memref<6x6x32xbf16, #tpu.memory_space<vmem>>, vector<6x1x32xbf16>,
    %cst_11 = arith.constant 0.000000e+00 : f32
    %6 = vector.broadcast %cst_11 : f32 to vector<4x4x32xf32>
    %c0_12 = arith.constant 0 : index
    %c0_13 = arith.constant 0 : index
    %c0_14 = arith.constant 0 : index
    %c0_15 = arith.constant 0 : index
    %7 = vector.load %arg1[%c0_12, %c0_13, %c0_14, %c0_15] : memref<1x4x4x32xbf16, #tpu.memory_space<vmem>>, vector<1x4x4x32xbf16>
    %8 = vector.shape_cast %7 : vector<1x4x4x32xbf16> to vector<4x4x32xbf16>
    %c1 = arith.constant 1 : index
    %c1_16 = arith.constant 1 : index
    %c0_17 = arith.constant 0 : index
    %9 = vector.load %arg7[%c1, %c1_16, %c0_17] : memref<6x6x32xbf16, #tpu.memory_space<vmem>>, vector<4x4x32xbf16>
    tpu.vector_store %arg7[%c1, %c1_16, %c0_17], %8 {strides = array<i32>} : memref<6x6x32xbf16, #tpu.memory_space<vmem>>, vector<4x4x32xbf16>,
    %c0_18 = arith.constant 0 : index
    %c0_19 = arith.constant 0 : index
    %c0_20 = arith.constant 0 : index
    %10 = vector.load %arg7[%c0_18, %c0_19, %c0_20] : memref<6x6x32xbf16, #tpu.memory_space<vmem>>, vector<6x4x32xbf16>
    %11 = vector.extract_strided_slice %10 {offsets = [0, 0, 0], sizes = [4, 4, 32], strides = [1, 1, 1]} : vector<6x4x32xbf16> to vector<4x4x32xbf16>
    %c0_21 = arith.constant 0 : index
    %c0_22 = arith.constant 0 : index
    %c0_23 = arith.constant 0 : index
    %c0_24 = arith.constant 0 : index
    %12 = vector.load %arg3[%c0_21, %c0_22, %c0_23, %c0_24] : memref<3x3x32x32xbf16, #tpu.memory_space<vmem>>, vector<1x1x32x32xbf16>
    %13 = vector.shape_cast %12 : vector<1x1x32x32xbf16> to vector<32x32xbf16>
    %cst_25 = arith.constant dense<0.000000e+00> : vector<4x4x32xf32>
    %14 = tpu.matmul %11, %13, %cst_25 {dimension_numbers = #tpu.dot_dimension_numbers<[2], [0], [0, 1], [1], [0, 0, 0, 1, 1, 1], [], []>} : vector<4x4x32xbf16>, vector<32x32xbf16>, vector<4x4x32xf32> -> vector<4x4x32xf32>
    %15 = arith.addf %6, %14 : vector<4x4x32xf32>
    %16 = vector.extract_strided_slice %10 {offsets = [1, 0, 0], sizes = [4, 4, 32], strides = [1, 1, 1]} : vector<6x4x32xbf16> to vector<4x4x32xbf16>
    %c1_26 = arith.constant 1 : index
    %c0_27 = arith.constant 0 : index
    %c0_28 = arith.constant 0 : index
    %c0_29 = arith.constant 0 : index
    %17 = vector.load %arg3[%c1_26, %c0_27, %c0_28, %c0_29] : memref<3x3x32x32xbf16, #tpu.memory_space<vmem>>, vector<1x1x32x32xbf16>
    %18 = vector.shape_cast %17 : vector<1x1x32x32xbf16> to vector<32x32xbf16>
    %cst_30 = arith.constant dense<0.000000e+00> : vector<4x4x32xf32>
    %19 = tpu.matmul %16, %18, %cst_30 {dimension_numbers = #tpu.dot_dimension_numbers<[2], [0], [0, 1], [1], [0, 0, 0, 1, 1, 1], [], []>} : vector<4x4x32xbf16>, vector<32x32xbf16>, vector<4x4x32xf32> -> vector<4x4x32xf32>
    %20 = arith.addf %15, %19 : vector<4x4x32xf32>
    %21 = vector.extract_strided_slice %10 {offsets = [2, 0, 0], sizes = [4, 4, 32], strides = [1, 1, 1]} : vector<6x4x32xbf16> to vector<4x4x32xbf16>
    %c2 = arith.constant 2 : index
    %c0_31 = arith.constant 0 : index
    %c0_32 = arith.constant 0 : index
    %c0_33 = arith.constant 0 : index
    %22 = vector.load %arg3[%c2, %c0_31, %c0_32, %c0_33] : memref<3x3x32x32xbf16, #tpu.memory_space<vmem>>, vector<1x1x32x32xbf16>
    %23 = vector.shape_cast %22 : vector<1x1x32x32xbf16> to vector<32x32xbf16>
    %cst_34 = arith.constant dense<0.000000e+00> : vector<4x4x32xf32>
    %24 = tpu.matmul %21, %23, %cst_34 {dimension_numbers = #tpu.dot_dimension_numbers<[2], [0], [0, 1], [1], [0, 0, 0, 1, 1, 1], [], []>} : vector<4x4x32xbf16>, vector<32x32xbf16>, vector<4x4x32xf32> -> vector<4x4x32xf32>
    %25 = arith.addf %20, %24 : vector<4x4x32xf32>
    %c0_35 = arith.constant 0 : index
    %c1_36 = arith.constant 1 : index
    %c0_37 = arith.constant 0 : index
    %26 = vector.load %arg7[%c0_35, %c1_36, %c0_37] : memref<6x6x32xbf16, #tpu.memory_space<vmem>>, vector<6x4x32xbf16>
    %27 = vector.extract_strided_slice %26 {offsets = [0, 0, 0], sizes = [4, 4, 32], strides = [1, 1, 1]} : vector<6x4x32xbf16> to vector<4x4x32xbf16>
    %c0_38 = arith.constant 0 : index
    %c1_39 = arith.constant 1 : index
    %c0_40 = arith.constant 0 : index
    %c0_41 = arith.constant 0 : index
    %28 = vector.load %arg3[%c0_38, %c1_39, %c0_40, %c0_41] : memref<3x3x32x32xbf16, #tpu.memory_space<vmem>>, vector<1x1x32x32xbf16>
    %29 = vector.shape_cast %28 : vector<1x1x32x32xbf16> to vector<32x32xbf16>
    %cst_42 = arith.constant dense<0.000000e+00> : vector<4x4x32xf32>
    %30 = tpu.matmul %27, %29, %cst_42 {dimension_numbers = #tpu.dot_dimension_numbers<[2], [0], [0, 1], [1], [0, 0, 0, 1, 1, 1], [], []>} : vector<4x4x32xbf16>, vector<32x32xbf16>, vector<4x4x32xf32> -> vector<4x4x32xf32>
    %31 = arith.addf %25, %30 : vector<4x4x32xf32>
    %32 = vector.extract_strided_slice %26 {offsets = [1, 0, 0], sizes = [4, 4, 32], strides = [1, 1, 1]} : vector<6x4x32xbf16> to vector<4x4x32xbf16>
    %c1_43 = arith.constant 1 : index
    %c1_44 = arith.constant 1 : index
    %c0_45 = arith.constant 0 : index
    %c0_46 = arith.constant 0 : index
    %33 = vector.load %arg3[%c1_43, %c1_44, %c0_45, %c0_46] : memref<3x3x32x32xbf16, #tpu.memory_space<vmem>>, vector<1x1x32x32xbf16>
    %34 = vector.shape_cast %33 : vector<1x1x32x32xbf16> to vector<32x32xbf16>
    %cst_47 = arith.constant dense<0.000000e+00> : vector<4x4x32xf32>
    %35 = tpu.matmul %32, %34, %cst_47 {dimension_numbers = #tpu.dot_dimension_numbers<[2], [0], [0, 1], [1], [0, 0, 0, 1, 1, 1], [], []>} : vector<4x4x32xbf16>, vector<32x32xbf16>, vector<4x4x32xf32> -> vector<4x4x32xf32>
    %36 = arith.addf %31, %35 : vector<4x4x32xf32>
    %37 = vector.extract_strided_slice %26 {offsets = [2, 0, 0], sizes = [4, 4, 32], strides = [1, 1, 1]} : vector<6x4x32xbf16> to vector<4x4x32xbf16>
    %c2_48 = arith.constant 2 : index
    %c1_49 = arith.constant 1 : index
    %c0_50 = arith.constant 0 : index
    %c0_51 = arith.constant 0 : index
    %38 = vector.load %arg3[%c2_48, %c1_49, %c0_50, %c0_51] : memref<3x3x32x32xbf16, #tpu.memory_space<vmem>>, vector<1x1x32x32xbf16>
    %39 = vector.shape_cast %38 : vector<1x1x32x32xbf16> to vector<32x32xbf16>
    %cst_52 = arith.constant dense<0.000000e+00> : vector<4x4x32xf32>
    %40 = tpu.matmul %37, %39, %cst_52 {dimension_numbers = #tpu.dot_dimension_numbers<[2], [0], [0, 1], [1], [0, 0, 0, 1, 1, 1], [], []>} : vector<4x4x32xbf16>, vector<32x32xbf16>, vector<4x4x32xf32> -> vector<4x4x32xf32>
    %41 = arith.addf %36, %40 : vector<4x4x32xf32>
    %c0_53 = arith.constant 0 : index
    %c2_54 = arith.constant 2 : index
    %c0_55 = arith.constant 0 : index
    %42 = vector.load %arg7[%c0_53, %c2_54, %c0_55] : memref<6x6x32xbf16, #tpu.memory_space<vmem>>, vector<6x4x32xbf16>
    %43 = vector.extract_strided_slice %42 {offsets = [0, 0, 0], sizes = [4, 4, 32], strides = [1, 1, 1]} : vector<6x4x32xbf16> to vector<4x4x32xbf16>
    %c0_56 = arith.constant 0 : index
    %c2_57 = arith.constant 2 : index
    %c0_58 = arith.constant 0 : index
    %c0_59 = arith.constant 0 : index
    %44 = vector.load %arg3[%c0_56, %c2_57, %c0_58, %c0_59] : memref<3x3x32x32xbf16, #tpu.memory_space<vmem>>, vector<1x1x32x32xbf16>
    %45 = vector.shape_cast %44 : vector<1x1x32x32xbf16> to vector<32x32xbf16>
    %cst_60 = arith.constant dense<0.000000e+00> : vector<4x4x32xf32>
    %46 = tpu.matmul %43, %45, %cst_60 {dimension_numbers = #tpu.dot_dimension_numbers<[2], [0], [0, 1], [1], [0, 0, 0, 1, 1, 1], [], []>} : vector<4x4x32xbf16>, vector<32x32xbf16>, vector<4x4x32xf32> -> vector<4x4x32xf32>
    %47 = arith.addf %41, %46 : vector<4x4x32xf32>
    %48 = vector.extract_strided_slice %42 {offsets = [1, 0, 0], sizes = [4, 4, 32], strides = [1, 1, 1]} : vector<6x4x32xbf16> to vector<4x4x32xbf16>
    %c1_61 = arith.constant 1 : index
    %c2_62 = arith.constant 2 : index
    %c0_63 = arith.constant 0 : index
    %c0_64 = arith.constant 0 : index
    %49 = vector.load %arg3[%c1_61, %c2_62, %c0_63, %c0_64] : memref<3x3x32x32xbf16, #tpu.memory_space<vmem>>, vector<1x1x32x32xbf16>
    %50 = vector.shape_cast %49 : vector<1x1x32x32xbf16> to vector<32x32xbf16>
    %cst_65 = arith.constant dense<0.000000e+00> : vector<4x4x32xf32>
    %51 = tpu.matmul %48, %50, %cst_65 {dimension_numbers = #tpu.dot_dimension_numbers<[2], [0], [0, 1], [1], [0, 0, 0, 1, 1, 1], [], []>} : vector<4x4x32xbf16>, vector<32x32xbf16>, vector<4x4x32xf32> -> vector<4x4x32xf32>
    %52 = arith.addf %47, %51 : vector<4x4x32xf32>
    %53 = vector.extract_strided_slice %42 {offsets = [2, 0, 0], sizes = [4, 4, 32], strides = [1, 1, 1]} : vector<6x4x32xbf16> to vector<4x4x32xbf16>
    %c2_66 = arith.constant 2 : index
    %c2_67 = arith.constant 2 : index
    %c0_68 = arith.constant 0 : index
    %c0_69 = arith.constant 0 : index
    %54 = vector.load %arg3[%c2_66, %c2_67, %c0_68, %c0_69] : memref<3x3x32x32xbf16, #tpu.memory_space<vmem>>, vector<1x1x32x32xbf16>
    %55 = vector.shape_cast %54 : vector<1x1x32x32xbf16> to vector<32x32xbf16>
    %cst_70 = arith.constant dense<0.000000e+00> : vector<4x4x32xf32>
    %56 = tpu.matmul %53, %55, %cst_70 {dimension_numbers = #tpu.dot_dimension_numbers<[2], [0], [0, 1], [1], [0, 0, 0, 1, 1, 1], [], []>} : vector<4x4x32xbf16>, vector<32x32xbf16>, vector<4x4x32xf32> -> vector<4x4x32xf32>
    %57 = arith.addf %52, %56 : vector<4x4x32xf32>
    %c0_71 = arith.constant 0 : index
    %c0_72 = arith.constant 0 : index
    %c0_73 = arith.constant 0 : index
    %c0_74 = arith.constant 0 : index
    %58 = vector.load %arg2[%c0_71, %c0_72, %c0_73, %c0_74] : memref<1x4x4x16xbf16, #tpu.memory_space<vmem>>, vector<1x4x4x16xbf16>
    %59 = vector.shape_cast %58 : vector<1x4x4x16xbf16> to vector<4x4x16xbf16>
    %c1_75 = arith.constant 1 : index
    %c1_76 = arith.constant 1 : index
    %c0_77 = arith.constant 0 : index
    %60 = vector.load %arg7[%c1_75, %c1_76, %c0_77] : memref<6x6x32xbf16, #tpu.memory_space<vmem>>, vector<4x4x16xbf16>
    tpu.vector_store %arg7[%c1_75, %c1_76, %c0_77], %59 {strides = array<i32>} : memref<6x6x32xbf16, #tpu.memory_space<vmem>>, vector<4x4x16xbf16>,
    %c0_78 = arith.constant 0 : index
    %c0_79 = arith.constant 0 : index
    %c0_80 = arith.constant 0 : index
    %61 = vector.load %arg7[%c0_78, %c0_79, %c0_80] : memref<6x6x32xbf16, #tpu.memory_space<vmem>>, vector<6x4x16xbf16>
    %62 = vector.extract_strided_slice %61 {offsets = [0, 0, 0], sizes = [4, 4, 16], strides = [1, 1, 1]} : vector<6x4x16xbf16> to vector<4x4x16xbf16>
    %c0_81 = arith.constant 0 : index
    %c0_82 = arith.constant 0 : index
    %c0_83 = arith.constant 0 : index
    %c0_84 = arith.constant 0 : index
    %63 = vector.load %arg4[%c0_81, %c0_82, %c0_83, %c0_84] : memref<3x3x16x32xbf16, #tpu.memory_space<vmem>>, vector<1x1x16x32xbf16>
    %64 = vector.shape_cast %63 : vector<1x1x16x32xbf16> to vector<16x32xbf16>
    %cst_85 = arith.constant dense<0.000000e+00> : vector<4x4x32xf32>
    %65 = tpu.matmul %62, %64, %cst_85 {dimension_numbers = #tpu.dot_dimension_numbers<[2], [0], [0, 1], [1], [0, 0, 0, 1, 1, 1], [], []>} : vector<4x4x16xbf16>, vector<16x32xbf16>, vector<4x4x32xf32> -> vector<4x4x32xf32>
    %66 = arith.addf %57, %65 : vector<4x4x32xf32>
    %67 = vector.extract_strided_slice %61 {offsets = [1, 0, 0], sizes = [4, 4, 16], strides = [1, 1, 1]} : vector<6x4x16xbf16> to vector<4x4x16xbf16>
    %c1_86 = arith.constant 1 : index
    %c0_87 = arith.constant 0 : index
    %c0_88 = arith.constant 0 : index
    %c0_89 = arith.constant 0 : index
    %68 = vector.load %arg4[%c1_86, %c0_87, %c0_88, %c0_89] : memref<3x3x16x32xbf16, #tpu.memory_space<vmem>>, vector<1x1x16x32xbf16>
    %69 = vector.shape_cast %68 : vector<1x1x16x32xbf16> to vector<16x32xbf16>
    %cst_90 = arith.constant dense<0.000000e+00> : vector<4x4x32xf32>
    %70 = tpu.matmul %67, %69, %cst_90 {dimension_numbers = #tpu.dot_dimension_numbers<[2], [0], [0, 1], [1], [0, 0, 0, 1, 1, 1], [], []>} : vector<4x4x16xbf16>, vector<16x32xbf16>, vector<4x4x32xf32> -> vector<4x4x32xf32>
    %71 = arith.addf %66, %70 : vector<4x4x32xf32>
    %72 = vector.extract_strided_slice %61 {offsets = [2, 0, 0], sizes = [4, 4, 16], strides = [1, 1, 1]} : vector<6x4x16xbf16> to vector<4x4x16xbf16>
    %c2_91 = arith.constant 2 : index
    %c0_92 = arith.constant 0 : index
    %c0_93 = arith.constant 0 : index
    %c0_94 = arith.constant 0 : index
    %73 = vector.load %arg4[%c2_91, %c0_92, %c0_93, %c0_94] : memref<3x3x16x32xbf16, #tpu.memory_space<vmem>>, vector<1x1x16x32xbf16>
    %74 = vector.shape_cast %73 : vector<1x1x16x32xbf16> to vector<16x32xbf16>
    %cst_95 = arith.constant dense<0.000000e+00> : vector<4x4x32xf32>
    %75 = tpu.matmul %72, %74, %cst_95 {dimension_numbers = #tpu.dot_dimension_numbers<[2], [0], [0, 1], [1], [0, 0, 0, 1, 1, 1], [], []>} : vector<4x4x16xbf16>, vector<16x32xbf16>, vector<4x4x32xf32> -> vector<4x4x32xf32>
    %76 = arith.addf %71, %75 : vector<4x4x32xf32>
    %c0_96 = arith.constant 0 : index
    %c1_97 = arith.constant 1 : index
    %c0_98 = arith.constant 0 : index
    %77 = vector.load %arg7[%c0_96, %c1_97, %c0_98] : memref<6x6x32xbf16, #tpu.memory_space<vmem>>, vector<6x4x16xbf16>
    %78 = vector.extract_strided_slice %77 {offsets = [0, 0, 0], sizes = [4, 4, 16], strides = [1, 1, 1]} : vector<6x4x16xbf16> to vector<4x4x16xbf16>
    %c0_99 = arith.constant 0 : index
    %c1_100 = arith.constant 1 : index
    %c0_101 = arith.constant 0 : index
    %c0_102 = arith.constant 0 : index
    %79 = vector.load %arg4[%c0_99, %c1_100, %c0_101, %c0_102] : memref<3x3x16x32xbf16, #tpu.memory_space<vmem>>, vector<1x1x16x32xbf16>
    %80 = vector.shape_cast %79 : vector<1x1x16x32xbf16> to vector<16x32xbf16>
    %cst_103 = arith.constant dense<0.000000e+00> : vector<4x4x32xf32>
    %81 = tpu.matmul %78, %80, %cst_103 {dimension_numbers = #tpu.dot_dimension_numbers<[2], [0], [0, 1], [1], [0, 0, 0, 1, 1, 1], [], []>} : vector<4x4x16xbf16>, vector<16x32xbf16>, vector<4x4x32xf32> -> vector<4x4x32xf32>
    %82 = arith.addf %76, %81 : vector<4x4x32xf32>
    %83 = vector.extract_strided_slice %77 {offsets = [1, 0, 0], sizes = [4, 4, 16], strides = [1, 1, 1]} : vector<6x4x16xbf16> to vector<4x4x16xbf16>
    %c1_104 = arith.constant 1 : index
    %c1_105 = arith.constant 1 : index
    %c0_106 = arith.constant 0 : index
    %c0_107 = arith.constant 0 : index
    %84 = vector.load %arg4[%c1_104, %c1_105, %c0_106, %c0_107] : memref<3x3x16x32xbf16, #tpu.memory_space<vmem>>, vector<1x1x16x32xbf16>
    %85 = vector.shape_cast %84 : vector<1x1x16x32xbf16> to vector<16x32xbf16>
    %cst_108 = arith.constant dense<0.000000e+00> : vector<4x4x32xf32>
    %86 = tpu.matmul %83, %85, %cst_108 {dimension_numbers = #tpu.dot_dimension_numbers<[2], [0], [0, 1], [1], [0, 0, 0, 1, 1, 1], [], []>} : vector<4x4x16xbf16>, vector<16x32xbf16>, vector<4x4x32xf32> -> vector<4x4x32xf32>
    %87 = arith.addf %82, %86 : vector<4x4x32xf32>
    %88 = vector.extract_strided_slice %77 {offsets = [2, 0, 0], sizes = [4, 4, 16], strides = [1, 1, 1]} : vector<6x4x16xbf16> to vector<4x4x16xbf16>
    %c2_109 = arith.constant 2 : index
    %c1_110 = arith.constant 1 : index
    %c0_111 = arith.constant 0 : index
    %c0_112 = arith.constant 0 : index
    %89 = vector.load %arg4[%c2_109, %c1_110, %c0_111, %c0_112] : memref<3x3x16x32xbf16, #tpu.memory_space<vmem>>, vector<1x1x16x32xbf16>
    %90 = vector.shape_cast %89 : vector<1x1x16x32xbf16> to vector<16x32xbf16>
    %cst_113 = arith.constant dense<0.000000e+00> : vector<4x4x32xf32>
    %91 = tpu.matmul %88, %90, %cst_113 {dimension_numbers = #tpu.dot_dimension_numbers<[2], [0], [0, 1], [1], [0, 0, 0, 1, 1, 1], [], []>} : vector<4x4x16xbf16>, vector<16x32xbf16>, vector<4x4x32xf32> -> vector<4x4x32xf32>
    %92 = arith.addf %87, %91 : vector<4x4x32xf32>
    %c0_114 = arith.constant 0 : index
    %c2_115 = arith.constant 2 : index
    %c0_116 = arith.constant 0 : index
    %93 = vector.load %arg7[%c0_114, %c2_115, %c0_116] : memref<6x6x32xbf16, #tpu.memory_space<vmem>>, vector<6x4x16xbf16>
    %94 = vector.extract_strided_slice %93 {offsets = [0, 0, 0], sizes = [4, 4, 16], strides = [1, 1, 1]} : vector<6x4x16xbf16> to vector<4x4x16xbf16>
    %c0_117 = arith.constant 0 : index
    %c2_118 = arith.constant 2 : index
    %c0_119 = arith.constant 0 : index
    %c0_120 = arith.constant 0 : index
    %95 = vector.load %arg4[%c0_117, %c2_118, %c0_119, %c0_120] : memref<3x3x16x32xbf16, #tpu.memory_space<vmem>>, vector<1x1x16x32xbf16>
    %96 = vector.shape_cast %95 : vector<1x1x16x32xbf16> to vector<16x32xbf16>
    %cst_121 = arith.constant dense<0.000000e+00> : vector<4x4x32xf32>
    %97 = tpu.matmul %94, %96, %cst_121 {dimension_numbers = #tpu.dot_dimension_numbers<[2], [0], [0, 1], [1], [0, 0, 0, 1, 1, 1], [], []>} : vector<4x4x16xbf16>, vector<16x32xbf16>, vector<4x4x32xf32> -> vector<4x4x32xf32>
    %98 = arith.addf %92, %97 : vector<4x4x32xf32>
    %99 = vector.extract_strided_slice %93 {offsets = [1, 0, 0], sizes = [4, 4, 16], strides = [1, 1, 1]} : vector<6x4x16xbf16> to vector<4x4x16xbf16>
    %c1_122 = arith.constant 1 : index
    %c2_123 = arith.constant 2 : index
    %c0_124 = arith.constant 0 : index
    %c0_125 = arith.constant 0 : index
    %100 = vector.load %arg4[%c1_122, %c2_123, %c0_124, %c0_125] : memref<3x3x16x32xbf16, #tpu.memory_space<vmem>>, vector<1x1x16x32xbf16>
    %101 = vector.shape_cast %100 : vector<1x1x16x32xbf16> to vector<16x32xbf16>
    %cst_126 = arith.constant dense<0.000000e+00> : vector<4x4x32xf32>
    %102 = tpu.matmul %99, %101, %cst_126 {dimension_numbers = #tpu.dot_dimension_numbers<[2], [0], [0, 1], [1], [0, 0, 0, 1, 1, 1], [], []>} : vector<4x4x16xbf16>, vector<16x32xbf16>, vector<4x4x32xf32> -> vector<4x4x32xf32>
    %103 = arith.addf %98, %102 : vector<4x4x32xf32>
    %104 = vector.extract_strided_slice %93 {offsets = [2, 0, 0], sizes = [4, 4, 16], strides = [1, 1, 1]} : vector<6x4x16xbf16> to vector<4x4x16xbf16>
    %c2_127 = arith.constant 2 : index
    %c2_128 = arith.constant 2 : index
    %c0_129 = arith.constant 0 : index
    %c0_130 = arith.constant 0 : index
    %105 = vector.load %arg4[%c2_127, %c2_128, %c0_129, %c0_130] : memref<3x3x16x32xbf16, #tpu.memory_space<vmem>>, vector<1x1x16x32xbf16>
    %106 = vector.shape_cast %105 : vector<1x1x16x32xbf16> to vector<16x32xbf16>
    %cst_131 = arith.constant dense<0.000000e+00> : vector<4x4x32xf32>
    %107 = tpu.matmul %104, %106, %cst_131 {dimension_numbers = #tpu.dot_dimension_numbers<[2], [0], [0, 1], [1], [0, 0, 0, 1, 1, 1], [], []>} : vector<4x4x16xbf16>, vector<16x32xbf16>, vector<4x4x32xf32> -> vector<4x4x32xf32>
    %108 = arith.addf %103, %107 : vector<4x4x32xf32>
    %c0_132 = arith.constant 0 : index
    %c0_133 = arith.constant 0 : index
    %109 = vector.load %arg5[%c0_132, %c0_133] : memref<1x32xf32, #tpu.memory_space<vmem>>, vector<1x32xf32>
    %110 = vector.shape_cast %109 : vector<1x32xf32> to vector<32xf32>
    %111 = vector.shape_cast %110 : vector<32xf32> to vector<1x1x32xf32>
    %112 = vector.broadcast %111 : vector<1x1x32xf32> to vector<4x4x32xf32>
    %113 = arith.addf %108, %112 : vector<4x4x32xf32>
    %cst_134 = arith.constant 0.000000e+00 : f32
    %114 = vector.broadcast %cst_134 : f32 to vector<4x4x32xf32>
    %115 = arith.maximumf %113, %114 : vector<4x4x32xf32>
    %116 = vector.shape_cast %115 : vector<4x4x32xf32> to vector<1x4x4x32xf32>
    %117 = arith.truncf %116 : vector<1x4x4x32xf32> to vector<1x4x4x32xbf16>
    %c0_135 = arith.constant 0 : index
    %c0_136 = arith.constant 0 : index
    %c0_137 = arith.constant 0 : index
    %c0_138 = arith.constant 0 : index
    %118 = vector.load %arg6[%c0_135, %c0_136, %c0_137, %c0_138] : memref<1x4x4x32xbf16, #tpu.memory_space<vmem>>, vector<1x4x4x32xbf16>
    tpu.vector_store %arg6[%c0_135, %c0_136, %c0_137, %c0_138], %117 {strides = array<i32>} : memref<1x4x4x32xbf16, #tpu.memory_space<vmem>>, vector<1x4x4x32xbf16>,
    return
  }
  func.func @transform_0(%arg0: i32) -> (i32, i32, i32, i32) {
    %c0_i32 = arith.constant 0 : i32
    %c0_i32_0 = arith.constant 0 : i32
    %c0_i32_1 = arith.constant 0 : i32
    %c0_i32_2 = arith.constant 0 : i32
    return %arg0, %c0_i32, %c0_i32_0, %c0_i32_1 : i32, i32, i32, i32
  }
  func.func @transform_1(%arg0: i32) -> (i32, i32, i32, i32) {
    %c0_i32 = arith.constant 0 : i32
    %c0_i32_0 = arith.constant 0 : i32
    %c0_i32_1 = arith.constant 0 : i32
    %c0_i32_2 = arith.constant 0 : i32
    return %arg0, %c0_i32, %c0_i32_0, %c0_i32_1 : i32, i32, i32, i32
  }
  func.func @transform_2(%arg0: i32) -> (i32, i32, i32, i32) {
    %c0_i32 = arith.constant 0 : i32
    %c0_i32_0 = arith.constant 0 : i32
    %c0_i32_1 = arith.constant 0 : i32
    %c0_i32_2 = arith.constant 0 : i32
    %c0_i32_3 = arith.constant 0 : i32
    return %c0_i32, %c0_i32_0, %c0_i32_1, %c0_i32_2 : i32, i32, i32, i32
  }
  func.func @transform_3(%arg0: i32) -> (i32, i32, i32, i32) {
    %c0_i32 = arith.constant 0 : i32
    %c0_i32_0 = arith.constant 0 : i32
    %c0_i32_1 = arith.constant 0 : i32
    %c0_i32_2 = arith.constant 0 : i32
    %c0_i32_3 = arith.constant 0 : i32
    return %c0_i32, %c0_i32_0, %c0_i32_1, %c0_i32_2 : i32, i32, i32, i32
  }
  func.func @transform_4(%arg0: i32) -> (i32, i32) {
    %c0_i32 = arith.constant 0 : i32
    %c0_i32_0 = arith.constant 0 : i32
    %c0_i32_1 = arith.constant 0 : i32
    return %c0_i32, %c0_i32_0 : i32, i32
  }
  func.func @transform_5(%arg0: i32) -> (i32, i32, i32, i32) {
    %c0_i32 = arith.constant 0 : i32
    %c0_i32_0 = arith.constant 0 : i32
    %c0_i32_1 = arith.constant 0 : i32
    %c0_i32_2 = arith.constant 0 : i32
    return %arg0, %c0_i32, %c0_i32_0, %c0_i32_1 : i32, i32, i32, i32
  }
}

</mosaic_0001>

<llo_original>
// kernel: tpu_custom_call.1
$region0: #{tpu_custom_call.1}
  #allocation0 [shape = 'u32[]', space=smem, size = 0x4, offset = 0x4, fixed_abs, tag = 'smem constant byte address 0x4 - core index']
  #allocation1 [shape = 'u32[144,128]{1,0:T(1,128)}', space=vmem, size = 0x12000, scoped, tag = 'internal scratch']
  #allocation2 [shape = 'bf16[6,6,32]{2,1,0:T(8,128)(2,1)}', space=vmem, size = 0x3000, scoped, tag = 'scratch operand']
  %s0 = inlined_call_operand.hbm [shape: bf16[2,4,4,32], index: 0, kind: input, shape index: {}]
  %s1 = inlined_call_operand.hbm [shape: bf16[2,4,4,16], index: 1, kind: input, shape index: {}]
  %s2 = inlined_call_operand.hbm [shape: bf16[3,3,32,32], index: 2, kind: input, shape index: {}]
  %s3 = inlined_call_operand.hbm [shape: bf16[3,3,16,32], index: 3, kind: input, shape index: {}]
  %s4 = inlined_call_operand.vmem [shape: f32[1,32], index: 4, kind: input, shape index: {}]
  %s5 = inlined_call_operand.hbm [shape: bf16[2,4,4,32], index: 5, kind: output, shape index: {}]
  %s6 = sld [smem:[#allocation0]]
  $region69: #{tpu_custom_call.1} parent=0
    _
  %s8 = ssub.s32 1, %s6
  %s9 = scalar_select 0, %s8, %s6
  $region1: #{tpu_custom_call.1} parent=0
    #allocation3 [shape = 'u8[8192]{0}', space=vmem, size = 0x2000, scoped, tag = 'input window, operand 0']
    #allocation4 [shape = 's32[2]{0}', space=sflag, size = 0x8, scoped, tag = 'scoped memory for tpu_custom_call.1']
    #allocation5 [shape = 's32[2]{0}', space=sflag, size = 0x8, scoped, tag = 'scoped memory for tpu_custom_call.1']
    #allocation6 [shape = 'u8[8192]{0}', space=vmem, size = 0x2000, scoped, tag = 'input window, operand 1']
    #allocation7 [shape = 's32[2]{0}', space=sflag, size = 0x8, scoped, tag = 'scoped memory for tpu_custom_call.1']
    #allocation8 [shape = 'u8[73728]{0}', space=vmem, size = 0x12000, scoped, tag = 'input window, operand 2, single buffered']
    #allocation9 [shape = 'u8[36864]{0}', space=vmem, size = 0x9000, scoped, tag = 'input window, operand 3, single buffered']
    #allocation10 [shape = 's32[1]{0}', space=sflag, size = 0x4, scoped, tag = 'scoped memory for tpu_custom_call.1']
    #allocation11 [shape = 'u8[8192]{0}', space=vmem, size = 0x2000, scoped, tag = 'output window, operand 0']
    %10 = vsyncpa [#allocation4], 0
    %s11 = scalar_lea.sflag [#allocation4], 1
    %12 = vsyncpa %s11, 0
    %13 = vsyncpa [#allocation7], 0
    %s14 = scalar_lea.sflag [#allocation7], 1
    %15 = vsyncpa %s14, 0
    %16 = vsyncpa [#allocation10], 0
    %17 = vsyncpa [#allocation5], 0
    %s18 = scalar_lea.sflag [#allocation5], 1
    %19 = vsyncpa %s18, 0
    loop: start=0, step=1, limit=4
    $region2: #{tpu_custom_call.1} parent=1 // loop_pre_header
      _
    $region3: #{tpu_custom_call.1} parent=1 // loop_header
      %s21 = sphi 0, %s25
      %p22 = scmp.ge.s32.totalorder %s21, 4
      %s31 = sphi 0, %s33
      %s34 = sphi 0, %s31
      %s35 = sphi 0, %s34
      %s51 = sphi 0, %s35
      %s57 = sphi 0, %s59
      %s60 = sphi 0, %s57
      %s61 = sphi 0, %s60
      %s77 = sphi 0, %s61
      %s81 = sphi 0, %s81
      %s83 = sphi 0, %s81
      %s84 = sphi 0, %s83
      %s98 = sphi 0, %s84
      %s102 = sphi 0, %s102
      %s104 = sphi 0, %s102
      %s105 = sphi 0, %s104
      %s119 = sphi 0, %s105
      %s123 = sphi 0, %s123
      %s125 = sphi 0, %s123
      %s126 = sphi 0, %s125
      %s140 = sphi 0, %s126
      %s146 = sphi 0, %s148
      %s149 = sphi 0, %s146
      %s150 = sphi 0, %s149
      %s166 = sphi 0, %s150
    $region4: #{tpu_custom_call.1} parent=1 // loop_header_branch
      %24 = sbr.rel (%p22) target = $region8
    $region5: #{tpu_custom_call.1} parent=1 // loop_body
      %s26 = ssub.s32 %s21, 1
      %s27 = ssub.s32 %s21, 2
      %s28 = sadd.s32 %s21, 1
      %s29 = ssub.s32 %s21, %s28
      %p30 = scmp.eq.s32.totalorder %s29, 0
      %s32 = sadd.s32 %s31, 1
      %s33 = scalar_select %p30, %s31, %s32
      %p36 = pneg %p30
      %p37 = scmp.eq.s32.totalorder %s21, 1
      %p38 = por %p36, %p37
      %p39 = scmp.ne.s32.totalorder %s31, %s34
      %p40 = scmp.eq.s32.totalorder %s21, 0
      %p41 = por %p39, %p40
      %p42 = scmp.ne.s32.totalorder %s31, %s34
      %p43 = scmp.eq.s32.totalorder %s26, 1
      %p44 = por %p42, %p43
      %p45 = scmp.ne.s32.totalorder %s34, %s35
      %p46 = scmp.eq.s32.totalorder %s26, 0
      %p47 = por %p45, %p46
      %p48 = scmp.ne.s32.totalorder %s34, %s35
      %p49 = scmp.eq.s32.totalorder %s27, 1
      %p50 = por %p48, %p49
      %p52 = scmp.ne.s32.totalorder %s35, %s51
      %p53 = scmp.eq.s32.totalorder %s27, 0
      %p54 = por %p52, %p53
      %s55 = ssub.s32 %s21, %s28
      %p56 = scmp.eq.s32.totalorder %s55, 0
      %s58 = sadd.s32 %s57, 1
      %s59 = scalar_select %p56, %s57, %s58
      %p62 = pneg %p56
      %p63 = scmp.eq.s32.totalorder %s21, 1
      %p64 = por %p62, %p63
      %p65 = scmp.ne.s32.totalorder %s57, %s60
      %p66 = scmp.eq.s32.totalorder %s21, 0
      %p67 = por %p65, %p66
      %p68 = scmp.ne.s32.totalorder %s57, %s60
      %p69 = scmp.eq.s32.totalorder %s26, 1
      %p70 = por %p68, %p69
      %p71 = scmp.ne.s32.totalorder %s60, %s61
      %p72 = scmp.eq.s32.totalorder %s26, 0
      %p73 = por %p71, %p72
      %p74 = scmp.ne.s32.totalorder %s60, %s61
      %p75 = scmp.eq.s32.totalorder %s27, 1
      %p76 = por %p74, %p75
      %p78 = scmp.ne.s32.totalorder %s61, %s77
      %p79 = scmp.eq.s32.totalorder %s27, 0
      %p80 = por %p78, %p79
      %s82 = sadd.s32 %s81, 1
      %p85 = scmp.eq.s32.totalorder %s21, 1
      %p86 = scmp.ne.s32.totalorder %s81, %s83
      %p87 = scmp.eq.s32.totalorder %s21, 0
      %p88 = por %p86, %p87
      %p89 = scmp.ne.s32.totalorder %s81, %s83
      %p90 = scmp.eq.s32.totalorder %s26, 1
      %p91 = por %p89, %p90
      %p92 = scmp.ne.s32.totalorder %s83, %s84
      %p93 = scmp.eq.s32.totalorder %s26, 0
      %p94 = por %p92, %p93
      %p95 = scmp.ne.s32.totalorder %s83, %s84
      %p96 = scmp.eq.s32.totalorder %s27, 1
      %p97 = por %p95, %p96
      %p99 = scmp.ne.s32.totalorder %s84, %s98
      %p100 = scmp.eq.s32.totalorder %s27, 0
      %p101 = por %p99, %p100
      %s103 = sadd.s32 %s102, 1
      %p106 = scmp.eq.s32.totalorder %s21, 1
      %p107 = scmp.ne.s32.totalorder %s102, %s104
      %p108 = scmp.eq.s32.totalorder %s21, 0
      %p109 = por %p107, %p108
      %p110 = scmp.ne.s32.totalorder %s102, %s104
      %p111 = scmp.eq.s32.totalorder %s26, 1
      %p112 = por %p110, %p111
      %p113 = scmp.ne.s32.totalorder %s104, %s105
      %p114 = scmp.eq.s32.totalorder %s26, 0
      %p115 = por %p113, %p114
      %p116 = scmp.ne.s32.totalorder %s104, %s105
      %p117 = scmp.eq.s32.totalorder %s27, 1
      %p118 = por %p116, %p117
      %p120 = scmp.ne.s32.totalorder %s105, %s119
      %p121 = scmp.eq.s32.totalorder %s27, 0
      %p122 = por %p120, %p121
      %s124 = sadd.s32 %s123, 1
      %p127 = scmp.eq.s32.totalorder %s21, 1
      %p128 = scmp.ne.s32.totalorder %s123, %s125
      %p129 = scmp.eq.s32.totalorder %s21, 0
      %p130 = por %p128, %p129
      %p131 = scmp.ne.s32.totalorder %s123, %s125
      %p132 = scmp.eq.s32.totalorder %s26, 1
      %p133 = por %p131, %p132
      %p134 = scmp.ne.s32.totalorder %s125, %s126
      %p135 = scmp.eq.s32.totalorder %s26, 0
      %p136 = por %p134, %p135
      %p137 = scmp.ne.s32.totalorder %s125, %s126
      %p138 = scmp.eq.s32.totalorder %s27, 1
      %p139 = por %p137, %p138
      %p141 = scmp.ne.s32.totalorder %s126, %s140
      %p142 = scmp.eq.s32.totalorder %s27, 0
      %p143 = por %p141, %p142
      %s144 = ssub.s32 %s21, %s28
      %p145 = scmp.eq.s32.totalorder %s144, 0
      %s147 = sadd.s32 %s146, 1
      %s148 = scalar_select %p145, %s146, %s147
      %p151 = pneg %p145
      %p152 = scmp.eq.s32.totalorder %s21, 1
      %p153 = por %p151, %p152
      %p154 = scmp.ne.s32.totalorder %s146, %s149
      %p155 = scmp.eq.s32.totalorder %s21, 0
      %p156 = por %p154, %p155
      %p157 = scmp.ne.s32.totalorder %s146, %s149
      %p158 = scmp.eq.s32.totalorder %s26, 1
      %p159 = por %p157, %p158
      %p160 = scmp.ne.s32.totalorder %s149, %s150
      %p161 = scmp.eq.s32.totalorder %s26, 0
      %p162 = por %p160, %p161
      %p163 = scmp.ne.s32.totalorder %s149, %s150
      %p164 = scmp.eq.s32.totalorder %s27, 1
      %p165 = por %p163, %p164
      %p167 = scmp.ne.s32.totalorder %s150, %s166
      %p168 = scmp.eq.s32.totalorder %s27, 0
      %p169 = por %p167, %p168
      %p170 = scmp.le.s32.totalorder 1, %s21
      %p171 = scmp.lt.s32.totalorder %s21, 3
      %p172 = pnand %p170, %p171
      %p173 = pneg %p172
      // Predicated region
      $region9: #{tpu_custom_call.1} parent=5 // pred_check
        _
      $region10: #{tpu_custom_call.1} parent=5 // pred_check_branch
        %175 = sbr.rel (%p172) target = $region12
      $region11: #{tpu_custom_call.1} parent=5 // pred_region
        %s176 = ssub.s32 %s21, 1
        // Predicated region
        $region13: #{tpu_custom_call.1} parent=11 // pred_check
          %p177 = pneg %p94
        $region14: #{tpu_custom_call.1} parent=11 // pred_check_branch
          %179 = sbr.rel (%p177) target = $region16
        $region15: #{tpu_custom_call.1} parent=11 // pred_region
          %s181 = ssub.s32 2304, 2304
          %182 = vsyncadd [#allocation7], %s181
          %s183 = sshll.u32 [#allocation8], 4
          %s184 = int_to_ptr.vmem [resolvable:$true] %s183
          %189 = dma.hbm_to_vmem [thread:$0]  %s2, 2304, %s184, [#allocation7], 64, 64, 4
        $region16: #{tpu_custom_call.1} parent=11 // pred_fallthru
          _
        // Predicated region
        $region17: #{tpu_custom_call.1} parent=11 // pred_check
          %p190 = pneg %p115
        $region18: #{tpu_custom_call.1} parent=11 // pred_check_branch
          %192 = sbr.rel (%p190) target = $region20
        $region19: #{tpu_custom_call.1} parent=11 // pred_region
          %s194 = ssub.s32 1152, 1152
          %195 = vsyncadd [#allocation10], %s194
          %s196 = sshll.u32 [#allocation9], 4
          %s197 = int_to_ptr.vmem [resolvable:$true] %s196
          %202 = dma.hbm_to_vmem [thread:$0]  %s3, 1152, %s197, [#allocation10], 64, 64, 4
        $region20: #{tpu_custom_call.1} parent=11 // pred_fallthru
          _
        // Predicated region
        $region21: #{tpu_custom_call.1} parent=11 // pred_check
          %p203 = pneg %p136
        $region22: #{tpu_custom_call.1} parent=11 // pred_check_branch
          %205 = sbr.rel (%p203) target = $region24
        $region23: #{tpu_custom_call.1} parent=11 // pred_region
          _
        $region24: #{tpu_custom_call.1} parent=11 // pred_fallthru
          _
      $region12: #{tpu_custom_call.1} parent=5 // pred_fallthru
        _
      %p206 = scmp.lt.s32.totalorder %s21, 2
      // Predicated region
      $region25: #{tpu_custom_call.1} parent=5 // pred_check
        %p207 = pneg %p206
      $region26: #{tpu_custom_call.1} parent=5 // pred_check_branch
        %209 = sbr.rel (%p207) target = $region28
      $region27: #{tpu_custom_call.1} parent=5 // pred_region
        // Predicated region
        $region29: #{tpu_custom_call.1} parent=27 // pred_check
          %p210 = pneg %p41
        $region30: #{tpu_custom_call.1} parent=27 // pred_check_branch
          %212 = sbr.rel (%p210) target = $region32
        $region31: #{tpu_custom_call.1} parent=27 // pred_region
          %s213 = sand.u32 %s31, 1
          %s214 = scalar_lea.sflag [#allocation4], %s213
          %s215 = sand.u32 %s31, 1
          %s216 = smul.addr %s215, 8
          %s217 = scalar_lea.vmem [#allocation3], %s216
          %s219 = ssub.s32 128, 128
          %220 = vsyncadd %s214, %s219
          %s221 = smul.addr %s21, 4
          %s222 = smul.addr %s221, 32
          %s223 = scalar_lea.hbm %s0, %s222
          %s224 = sshll.u32 %s217, 4
          %s225 = int_to_ptr.vmem [resolvable:$true] %s224
          %230 = dma.hbm_to_vmem [thread:$0]  %s223, 128, %s225, %s214, 32, 32, 2
        $region32: #{tpu_custom_call.1} parent=27 // pred_fallthru
          _
        // Predicated region
        $region33: #{tpu_custom_call.1} parent=27 // pred_check
          %p231 = pneg %p67
        $region34: #{tpu_custom_call.1} parent=27 // pred_check_branch
          %233 = sbr.rel (%p231) target = $region36
        $region35: #{tpu_custom_call.1} parent=27 // pred_region
          %s234 = sand.u32 %s21, 1
          %s235 = scalar_lea.sflag [#allocation7], %s234
          %s236 = sand.u32 %s57, 1
          %s237 = smul.addr %s236, 8
          %s238 = scalar_lea.vmem [#allocation6], %s237
          %s240 = ssub.s32 128, 128
          %241 = vsyncadd %s235, %s240
          %s242 = smul.addr %s21, 4
          %s243 = smul.addr %s242, 32
          %s244 = scalar_lea.hbm %s1, %s243
          %s245 = sshll.u32 %s238, 4
          %s246 = int_to_ptr.vmem [resolvable:$true] %s245
          %251 = dma.hbm_to_vmem [thread:$0]  %s244, 128, %s246, %s235, 32, 32, 2
        $region36: #{tpu_custom_call.1} parent=27 // pred_fallthru
          _
      $region28: #{tpu_custom_call.1} parent=5 // pred_fallthru
        _
      %p252 = scmp.le.s32.totalorder 1, %s21
      %p253 = scmp.lt.s32.totalorder %s21, 3
      %p254 = pnand %p252, %p253
      %p255 = pneg %p254
      // Predicated region
      $region37: #{tpu_custom_call.1} parent=5 // pred_check
        _
      $region38: #{tpu_custom_call.1} parent=5 // pred_check_branch
        %257 = sbr.rel (%p254) target = $region40
      $region39: #{tpu_custom_call.1} parent=5 // pred_region
        %s258 = ssub.s32 %s21, 1
        %s259 = sand.u32 %s34, 1
        %s260 = scalar_lea.sflag [#allocation4], %s259
        %s261 = sand.u32 %s34, 1
        %s262 = smul.addr %s261, 8
        %s263 = scalar_lea.vmem [#allocation3], %s262
        // Predicated region
        $region41: #{tpu_custom_call.1} parent=39 // pred_check
          %p264 = pneg %p47
        $region42: #{tpu_custom_call.1} parent=39 // pred_check_branch
          %266 = sbr.rel (%p264) target = $region44
        $region43: #{tpu_custom_call.1} parent=39 // pred_region
          %267 = dma.done %s260, 128
        $region44: #{tpu_custom_call.1} parent=39 // pred_fallthru
          _
        %s268 = sand.u32 %s26, 1
        %s269 = scalar_lea.sflag [#allocation7], %s268
        %s270 = sand.u32 %s60, 1
        %s271 = smul.addr %s270, 8
        %s272 = scalar_lea.vmem [#allocation6], %s271
        // Predicated region
        $region45: #{tpu_custom_call.1} parent=39 // pred_check
          %p273 = pneg %p73
        $region46: #{tpu_custom_call.1} parent=39 // pred_check_branch
          %275 = sbr.rel (%p273) target = $region48
        $region47: #{tpu_custom_call.1} parent=39 // pred_region
          %276 = dma.done %s269, 128
        $region48: #{tpu_custom_call.1} parent=39 // pred_fallthru
          _
        // Predicated region
        $region49: #{tpu_custom_call.1} parent=39 // pred_check
          %p277 = pneg %p94
        $region50: #{tpu_custom_call.1} parent=39 // pred_check_branch
          %279 = sbr.rel (%p277) target = $region52
        $region51: #{tpu_custom_call.1} parent=39 // pred_region
          %280 = dma.done [#allocation7], 2304
        $region52: #{tpu_custom_call.1} parent=39 // pred_fallthru
          _
        // Predicated region
        $region53: #{tpu_custom_call.1} parent=39 // pred_check
          %p281 = pneg %p115
        $region54: #{tpu_custom_call.1} parent=39 // pred_check_branch
          %283 = sbr.rel (%p281) target = $region56
        $region55: #{tpu_custom_call.1} parent=39 // pred_region
          %284 = dma.done [#allocation10], 1152
        $region56: #{tpu_custom_call.1} parent=39 // pred_fallthru
          _
        %s285 = sand.u32 %s34, 1
        %s286 = scalar_lea.sflag [#allocation4], %s285
        %s287 = sand.u32 %s34, 1
        %s288 = smul.addr %s287, 8
        %s289 = scalar_lea.vmem [#allocation3], %s288
        %p290 = pneg %p47
        %p291 = pneg %p44
        %s292 = sand.u32 %s26, 1
        %s293 = scalar_lea.sflag [#allocation7], %s292
        %s294 = sand.u32 %s60, 1
        %s295 = smul.addr %s294, 8
        %s296 = scalar_lea.vmem [#allocation6], %s295
        %p297 = pneg %p73
        %p298 = pneg %p70
        %p299 = pneg %p94
        %p300 = pneg %p91
        %p301 = pneg %p115
        %p302 = pneg %p112
        %p303 = pneg %p136
        %p304 = pneg %p133
        %p305 = pneg %p162
        %p306 = pneg %p159
        %s307 = sand.u32 %s149, 1
        %s308 = scalar_lea.sflag [#allocation5], %s307
        %s309 = sand.u32 %s149, 1
        %s310 = smul.addr %s309, 8
        %s311 = scalar_lea.vmem [#allocation11], %s310
        %vm313 = vcmask 256000
        %314 = vst.msk [vmem:[#allocation2] sm:$0x7] %vm313, 0
        %s315 = scalar_lea.vmem [#allocation2], 20
        %316 = vst.msk [vmem:[%s315] sm:$0x7] %vm313, 0
        %vm317 = vcmask 253952
        %vm318 = vsmask.f32 256
        %vm319 = vmand %vm317, %vm318
        %v320 = vld [vmem:[#allocation2] sm:$0x1]
        %v321 = vsel %vm319, 0, %v320
        %322 = vst [vmem:[#allocation2] sm:$0x1] %v321
        %v323 = vld [vmem:[#allocation2 + $0x4] sm:$0x1]
        %v324 = vsel %vm319, 0, %v323
        %325 = vst [vmem:[#allocation2 + $0x4] sm:$0x1] %v324
        %v326 = vld [vmem:[#allocation2 + $0x8] sm:$0x1]
        %v327 = vsel %vm319, 0, %v326
        %328 = vst [vmem:[#allocation2 + $0x8] sm:$0x1] %v327
        %v329 = vld [vmem:[#allocation2 + $0xc] sm:$0x1]
        %v330 = vsel %vm319, 0, %v329
        %331 = vst [vmem:[#allocation2 + $0xc] sm:$0x1] %v330
        %v332 = vld [vmem:[#allocation2 + $0x10] sm:$0x1]
        %v333 = vsel %vm319, 0, %v332
        %334 = vst [vmem:[#allocation2 + $0x10] sm:$0x1] %v333
        %v335 = vld [vmem:[#allocation2 + $0x14] sm:$0x1]
        %v336 = vsel %vm319, 0, %v335
        %337 = vst [vmem:[#allocation2 + $0x14] sm:$0x1] %v336
        %vm338 = vcmask 256002
        %vm339 = vsmask.f32 7946
        %vm340 = vmand %vm338, %vm339
        %v341 = vld [vmem:[#allocation2] sm:$0x4]
        %v342 = vsel %vm340, 0, %v341
        %343 = vst [vmem:[#allocation2] sm:$0x4] %v342
        %v344 = vld [vmem:[#allocation2 + $0x4] sm:$0x4]
        %v345 = vsel %vm340, 0, %v344
        %346 = vst [vmem:[#allocation2 + $0x4] sm:$0x4] %v345
        %v347 = vld [vmem:[#allocation2 + $0x8] sm:$0x4]
        %v348 = vsel %vm340, 0, %v347
        %349 = vst [vmem:[#allocation2 + $0x8] sm:$0x4] %v348
        %v350 = vld [vmem:[#allocation2 + $0xc] sm:$0x4]
        %v351 = vsel %vm340, 0, %v350
        %352 = vst [vmem:[#allocation2 + $0xc] sm:$0x4] %v351
        %v353 = vld [vmem:[#allocation2 + $0x10] sm:$0x4]
        %v354 = vsel %vm340, 0, %v353
        %355 = vst [vmem:[#allocation2 + $0x10] sm:$0x4] %v354
        %v356 = vld [vmem:[#allocation2 + $0x14] sm:$0x4]
        %v357 = vsel %vm340, 0, %v356
        %358 = vst [vmem:[#allocation2 + $0x14] sm:$0x4] %v357
        %v359 = vld [vmem:[%s263] sm:$0x3]
        %v360 = vld [vmem:[%s263 + $0x2] sm:$0x3]
        %v361 = vld [vmem:[%s263 + $0x4] sm:$0x3]
        %v362 = vld [vmem:[%s263 + $0x6] sm:$0x3]
        %v368 = vunpack.c.l.s4 1983009808
        %v369 = vunpack.c.0.s8 %v368
        %v370 = vlaneseq
        %v371 = vshrl.u32 %v370, 7
        %v372 = vsub.s32 %v369, %v371
        %v373 = vrot.slane %v359, %v372
        %v375 = vunpack.c.l.s4 1983009808
        %v376 = vunpack.c.0.s8 %v375
        %v377 = vlaneseq
        %v378 = vshrl.u32 %v377, 7
        %v379 = vsub.s32 %v376, %v378
        %v380 = vrot.slane %v360, %v379
        %v382 = vunpack.c.l.s4 1983009808
        %v383 = vunpack.c.0.s8 %v382
        %v384 = vlaneseq
        %v385 = vshrl.u32 %v384, 7
        %v386 = vsub.s32 %v383, %v385
        %v387 = vrot.slane %v361, %v386
        %v389 = vunpack.c.l.s4 1983009808
        %v390 = vunpack.c.0.s8 %v389
        %v391 = vlaneseq
        %v392 = vshrl.u32 %v391, 7
        %v393 = vsub.s32 %v390, %v392
        %v394 = vrot.slane %v362, %v393
        %v396 = vshrl.u32 %v373, 16
        %v398 = vrot.slane %v396, 7
        %v399 = vshll.u32 %v373, 16
        %v401 = vor.u32 %v398, %v399
        %v403 = vshrl.u32 %v380, 16
        %v405 = vrot.slane %v403, 7
        %v406 = vshll.u32 %v380, 16
        %v408 = vor.u32 %v405, %v406
        %v410 = vshrl.u32 %v387, 16
        %v412 = vrot.slane %v410, 7
        %v413 = vshll.u32 %v387, 16
        %v415 = vor.u32 %v412, %v413
        %v417 = vshrl.u32 %v394, 16
        %v419 = vrot.slane %v417, 7
        %v420 = vshll.u32 %v394, 16
        %v422 = vor.u32 %v419, %v420
        %s427 = scalar_lea.vmem [#allocation2], 4
        %vm428 = vcmask 256000
        %vm429 = vsmask.f32 2306
        %vm430 = vmand %vm428, %vm429
        %v431 = vld [vmem:[%s427] sm:$0x7]
        %v432 = vsel %vm430, %v401, %v431
        %433 = vst [vmem:[%s427] sm:$0x7] %v432
        %v434 = vld [vmem:[%s427 + $0x4] sm:$0x7]
        %v435 = vsel %vm430, %v408, %v434
        %436 = vst [vmem:[%s427 + $0x4] sm:$0x7] %v435
        %v437 = vld [vmem:[%s427 + $0x8] sm:$0x7]
        %v438 = vsel %vm430, %v415, %v437
        %439 = vst [vmem:[%s427 + $0x8] sm:$0x7] %v438
        %v440 = vld [vmem:[%s427 + $0xc] sm:$0x7]
        %v441 = vsel %vm430, %v422, %v440
        %442 = vst [vmem:[%s427 + $0xc] sm:$0x7] %v441
        %v443 = vld [vmem:[#allocation2] sm:$0x3]
        %v444 = vld [vmem:[#allocation2 + $0x4] sm:$0x3]
        %v445 = vld [vmem:[#allocation2 + $0x8] sm:$0x3]
        %v446 = vld [vmem:[#allocation2 + $0xc] sm:$0x3]
        %v447 = vld [vmem:[#allocation2 + $0x10] sm:$0x3]
        %v448 = vld [vmem:[#allocation2 + $0x14] sm:$0x3]
        %v449 = vld [vmem:[#allocation8] sm:$0xf]
        %v450 = vld [vmem:[#allocation8 + $0x4] sm:$0xf]
        %v451 = vld [vmem:[#allocation8 + $0x8] sm:$0xf]
        %v452 = vld [vmem:[#allocation8 + $0xc] sm:$0xf]
        %s453 = scalar_lea.vmem [#allocation8], 48
        %v454 = vld [vmem:[%s453] sm:$0xf]
        %v455 = vld [vmem:[%s453 + $0x4] sm:$0xf]
        %v456 = vld [vmem:[%s453 + $0x8] sm:$0xf]
        %v457 = vld [vmem:[%s453 + $0xc] sm:$0xf]
        %v462 = vcombine.low %v444, %v445
        %v463 = vcombine.low %v446, %v447
        %v465 = vunpack.c.l.s4 1983009808
        %v466 = vunpack.c.0.s8 %v465
        %v467 = vlaneseq
        %v468 = vshrl.u32 %v467, 7
        %v469 = vsub.s32 %v466, %v468
        %v470 = vrot.slane %v462, %v469
        %v472 = vunpack.c.l.s4 1983009808
        %v473 = vunpack.c.0.s8 %v472
        %v474 = vlaneseq
        %v475 = vshrl.u32 %v474, 7
        %v476 = vsub.s32 %v473, %v475
        %v477 = vrot.slane %v463, %v476
        %v478 = vcombine.low %v470, %v477
        %v483 = vunpack.c.l.b16 %v454
        %v484 = vunpack.c.l.b16 %v455
        %v485 = vunpack.c.l.b16 %v456
        %v486 = vunpack.c.l.b16 %v457
        %v487 = vpack.c.b16 %v484, %v483
        %v488 = vpack.c.b16 %v486, %v485
        %vm491 = vcmask 261120
        %v493 = vsel %vm491, %v478, 0
        %495 = vmatprep.subr.bf16.mxu0 0
        %496 = vmatpush1.bf16.msra.mxu0 %v487
        %497 = vmatprep.subr.bf16.mxu0 0
        %498 = vmatpush1.bf16.msra.mxu0 %v488
        %499 = vmatprep.subr.bf16.mxu0 0
        %500 = vmatpush1.bf16.msra.mxu0 0
        %501 = vmatprep.subr.bf16.mxu0 0
        %502 = vmatpush1.bf16.msra.mxu0 0
        %503 = vmatprep.subr.bf16.mxu0 0
        %504 = vmatpush1.bf16.msra.mxu0 0
        %505 = vmatprep.subr.bf16.mxu0 0
        %506 = vmatpush1.bf16.msra.mxu0 0
        %507 = vmatprep.subr.bf16.mxu0 0
        %508 = vmatpush1.bf16.msra.mxu0 0
        %509 = vmatprep.subr.bf16.mxu0 0
        %510 = vmatpush1.bf16.msra.mxu0 0
        %511 = vmatprep.subr.bf16.mxu0 0
        %512 = vmatpush1.bf16.msra.mxu0 0
        %513 = vmatprep.subr.bf16.mxu0 0
        %514 = vmatpush1.bf16.msra.mxu0 0
        %515 = vmatprep.subr.bf16.mxu0 0
        %516 = vmatpush1.bf16.msra.mxu0 0
        %517 = vmatprep.subr.bf16.mxu0 0
        %518 = vmatpush1.bf16.msra.mxu0 0
        %519 = vmatprep.subr.bf16.mxu0 0
        %520 = vmatpush1.bf16.msra.mxu0 0
        %521 = vmatprep.subr.bf16.mxu0 0
        %522 = vmatpush1.bf16.msra.mxu0 0
        %523 = vmatprep.subr.bf16.mxu0 0
        %524 = vmatpush1.bf16.msra.mxu0 0
        %525 = vmatprep.subr.bf16.mxu0 0
        %526 = vmatpush1.bf16.msra.mxu0 0
        %527 = vmatprep.mubr.bf16.mxu0 0
        %528 = vmatmul.mubr.bf16.gmra.mrb[0].mxu0 %v493
        %v529 = vpop.f32.mrb[0].mxu0
        %v530 = vadd.f32 0.0, %v529
        %v531 = vpop.f32.mrb[0].mxu0
        %v532 = vpop.f32.mrb[0].mxu0
        %v533 = vadd.f32 0.0, %v532
        %v534 = vpop.f32.mrb[0].mxu0
        %535 = vdwg.mxu0
        %v537 = vcombine.low %v443, %v444
        %v538 = vcombine.low %v445, %v446
        %v540 = vunpack.c.l.s4 1983009808
        %v541 = vunpack.c.0.s8 %v540
        %v542 = vlaneseq
        %v543 = vshrl.u32 %v542, 7
        %v544 = vsub.s32 %v541, %v543
        %v545 = vrot.slane %v537, %v544
        %v547 = vunpack.c.l.s4 1983009808
        %v548 = vunpack.c.0.s8 %v547
        %v549 = vlaneseq
        %v550 = vshrl.u32 %v549, 7
        %v551 = vsub.s32 %v548, %v550
        %v552 = vrot.slane %v538, %v551
        %v553 = vcombine.low %v545, %v552
        %v558 = vunpack.c.l.b16 %v449
        %v559 = vunpack.c.l.b16 %v450
        %v560 = vunpack.c.l.b16 %v451
        %v561 = vunpack.c.l.b16 %v452
        %v562 = vpack.c.b16 %v559, %v558
        %v563 = vpack.c.b16 %v561, %v560
        %v567 = vsel %vm491, %v553, 0
        %569 = vmatprep.subr.bf16.mxu0 0
        %570 = vmatpush1.bf16.msra.mxu0 %v562
        %571 = vmatprep.subr.bf16.mxu0 0
        %572 = vmatpush1.bf16.msra.mxu0 %v563
        %573 = vmatprep.subr.bf16.mxu0 0
        %574 = vmatpush1.bf16.msra.mxu0 0
        %575 = vmatprep.subr.bf16.mxu0 0
        %576 = vmatpush1.bf16.msra.mxu0 0
        %577 = vmatprep.subr.bf16.mxu0 0
        %578 = vmatpush1.bf16.msra.mxu0 0
        %579 = vmatprep.subr.bf16.mxu0 0
        %580 = vmatpush1.bf16.msra.mxu0 0
        %581 = vmatprep.subr.bf16.mxu0 0
        %582 = vmatpush1.bf16.msra.mxu0 0
        %583 = vmatprep.subr.bf16.mxu0 0
        %584 = vmatpush1.bf16.msra.mxu0 0
        %585 = vmatprep.subr.bf16.mxu0 0
        %586 = vmatpush1.bf16.msra.mxu0 0
        %587 = vmatprep.subr.bf16.mxu0 0
        %588 = vmatpush1.bf16.msra.mxu0 0
        %589 = vmatprep.subr.bf16.mxu0 0
        %590 = vmatpush1.bf16.msra.mxu0 0
        %591 = vmatprep.subr.bf16.mxu0 0
        %592 = vmatpush1.bf16.msra.mxu0 0
        %593 = vmatprep.subr.bf16.mxu0 0
        %594 = vmatpush1.bf16.msra.mxu0 0
        %595 = vmatprep.subr.bf16.mxu0 0
        %596 = vmatpush1.bf16.msra.mxu0 0
        %597 = vmatprep.subr.bf16.mxu0 0
        %598 = vmatpush1.bf16.msra.mxu0 0
        %599 = vmatprep.subr.bf16.mxu0 0
        %600 = vmatpush1.bf16.msra.mxu0 0
        %601 = vmatprep.mubr.bf16.mxu0 0
        %602 = vmatmul.mubr.bf16.gmra.mrb[0].mxu0 %v567
        %v603 = vpop.f32.mrb[0].mxu0
        %v604 = vadd.f32 %v530, %v603
        %v605 = vpop.f32.mrb[0].mxu0
        %v606 = vpop.f32.mrb[0].mxu0
        %v607 = vadd.f32 %v533, %v606
        %v608 = vpop.f32.mrb[0].mxu0
        %609 = vdwg.mxu0
        %v612 = vcombine.high %v604, %v604
        %v613 = vcombine.high %v607, %v607
        %s616 = scalar_lea.vmem [#allocation8], 96
        %v617 = vld [vmem:[%s616] sm:$0xf]
        %v618 = vld [vmem:[%s616 + $0x4] sm:$0xf]
        %v619 = vld [vmem:[%s616 + $0x8] sm:$0xf]
        %v620 = vld [vmem:[%s616 + $0xc] sm:$0xf]
        %v622 = vcombine.low %v447, %v448
        %v624 = vunpack.c.l.s4 1983009808
        %v625 = vunpack.c.0.s8 %v624
        %v626 = vlaneseq
        %v627 = vshrl.u32 %v626, 7
        %v628 = vsub.s32 %v625, %v627
        %v629 = vrot.slane %v622, %v628
        %v630 = vcombine.low %v552, %v629
        %v635 = vunpack.c.l.b16 %v617
        %v636 = vunpack.c.l.b16 %v618
        %v637 = vunpack.c.l.b16 %v619
        %v638 = vunpack.c.l.b16 %v620
        %v639 = vpack.c.b16 %v636, %v635
        %v640 = vpack.c.b16 %v638, %v637
        %v644 = vsel %vm491, %v630, 0
        %646 = vmatprep.subr.bf16.mxu0 0
        %647 = vmatpush1.bf16.msra.mxu0 %v639
        %648 = vmatprep.subr.bf16.mxu0 0
        %649 = vmatpush1.bf16.msra.mxu0 %v640
        %650 = vmatprep.subr.bf16.mxu0 0
        %651 = vmatpush1.bf16.msra.mxu0 0
        %652 = vmatprep.subr.bf16.mxu0 0
        %653 = vmatpush1.bf16.msra.mxu0 0
        %654 = vmatprep.subr.bf16.mxu0 0
        %655 = vmatpush1.bf16.msra.mxu0 0
        %656 = vmatprep.subr.bf16.mxu0 0
        %657 = vmatpush1.bf16.msra.mxu0 0
        %658 = vmatprep.subr.bf16.mxu0 0
        %659 = vmatpush1.bf16.msra.mxu0 0
        %660 = vmatprep.subr.bf16.mxu0 0
        %661 = vmatpush1.bf16.msra.mxu0 0
        %662 = vmatprep.subr.bf16.mxu0 0
        %663 = vmatpush1.bf16.msra.mxu0 0
        %664 = vmatprep.subr.bf16.mxu0 0
        %665 = vmatpush1.bf16.msra.mxu0 0
        %666 = vmatprep.subr.bf16.mxu0 0
        %667 = vmatpush1.bf16.msra.mxu0 0
        %668 = vmatprep.subr.bf16.mxu0 0
        %669 = vmatpush1.bf16.msra.mxu0 0
        %670 = vmatprep.subr.bf16.mxu0 0
        %671 = vmatpush1.bf16.msra.mxu0 0
        %672 = vmatprep.subr.bf16.mxu0 0
        %673 = vmatpush1.bf16.msra.mxu0 0
        %674 = vmatprep.subr.bf16.mxu0 0
        %675 = vmatpush1.bf16.msra.mxu0 0
        %676 = vmatprep.subr.bf16.mxu0 0
        %677 = vmatpush1.bf16.msra.mxu0 0
        %678 = vmatprep.mubr.bf16.mxu0 0
        %679 = vmatmul.mubr.bf16.gmra.mrb[0].mxu0 %v644
        %v680 = vpop.f32.mrb[0].mxu0
        %v681 = vadd.f32 0.0, %v680
        %v682 = vpop.f32.mrb[0].mxu0
        %v683 = vpop.f32.mrb[0].mxu0
        %v684 = vadd.f32 0.0, %v683
        %v685 = vpop.f32.mrb[0].mxu0
        %686 = vdwg.mxu0
        %v689 = vcombine.high %v681, %v681
        %v690 = vcombine.high %v684, %v684
        %v693 = vadd.f32 %v604, %v681
        %v694 = vadd.f32 %v612, %v689
        %v695 = vadd.f32 %v607, %v684
        %v696 = vadd.f32 %v613, %v690
        %v697 = vld [vmem:[#allocation2] sm:$0x7]
        %v698 = vld [vmem:[#allocation2 + $0x4] sm:$0x7]
        %v699 = vld [vmem:[#allocation2 + $0x8] sm:$0x7]
        %v700 = vld [vmem:[#allocation2 + $0xc] sm:$0x7]
        %v701 = vld [vmem:[#allocation2 + $0x10] sm:$0x7]
        %v702 = vld [vmem:[#allocation2 + $0x14] sm:$0x7]
        %s703 = scalar_lea.vmem [#allocation8], 16
        %v704 = vld [vmem:[%s703] sm:$0xf]
        %v705 = vld [vmem:[%s703 + $0x4] sm:$0xf]
        %v706 = vld [vmem:[%s703 + $0x8] sm:$0xf]
        %v707 = vld [vmem:[%s703 + $0xc] sm:$0xf]
        %v713 = vunpack.c.l.s4 1983009808
        %v714 = vunpack.c.0.s8 %v713
        %v715 = vlaneseq
        %v716 = vshrl.u32 %v715, 7
        %v717 = vsub.s32 %v714, %v716
        %v718 = vrot.slane %v697, %v717
        %v719 = vcombine.high %v718, %v718
        %v721 = vunpack.c.l.s4 1983009808
        %v722 = vunpack.c.0.s8 %v721
        %v723 = vlaneseq
        %v724 = vshrl.u32 %v723, 7
        %v725 = vsub.s32 %v722, %v724
        %v726 = vrot.slane %v698, %v725
        %v727 = vcombine.high %v726, %v726
        %v729 = vunpack.c.l.s4 1983009808
        %v730 = vunpack.c.0.s8 %v729
        %v731 = vlaneseq
        %v732 = vshrl.u32 %v731, 7
        %v733 = vsub.s32 %v730, %v732
        %v734 = vrot.slane %v699, %v733
        %v735 = vcombine.high %v734, %v734
        %v737 = vunpack.c.l.s4 1983009808
        %v738 = vunpack.c.0.s8 %v737
        %v739 = vlaneseq
        %v740 = vshrl.u32 %v739, 7
        %v741 = vsub.s32 %v738, %v740
        %v742 = vrot.slane %v700, %v741
        %v743 = vcombine.high %v742, %v742
        %vm744 = vsmask.f32 1280
        %vm745 = vsmask.f32 3336
        %vm746 = vmor %vm744, %vm745
        %vm747 = vsmask.f32 5392
        %vm748 = vmor %vm746, %vm747
        %vm749 = vsmask.f32 7448
        %vm750 = vmor %vm748, %vm749
        %v752 = vshrl.u32 %v718, 16
        %v754 = vrot.slane %v752, 6
        %v755 = vshll.u32 %v718, 16
        %v757 = vrot.slane %v755, 7
        %v758 = vor.u32 %v754, %v757
        %v759 = vrot.slane %v758, 2
        %v761 = vshll.u32 %v719, 16
        %v763 = vrot.slane %v761, 7
        %v764 = vsel %vm750, %v759, %v763
        %v766 = vshrl.u32 %v726, 16
        %v768 = vrot.slane %v766, 6
        %v769 = vshll.u32 %v726, 16
        %v771 = vrot.slane %v769, 7
        %v772 = vor.u32 %v768, %v771
        %v773 = vrot.slane %v772, 2
        %v775 = vshll.u32 %v727, 16
        %v777 = vrot.slane %v775, 7
        %v778 = vsel %vm750, %v773, %v777
        %v780 = vshrl.u32 %v734, 16
        %v782 = vrot.slane %v780, 6
        %v783 = vshll.u32 %v734, 16
        %v785 = vrot.slane %v783, 7
        %v786 = vor.u32 %v782, %v785
        %v787 = vrot.slane %v786, 2
        %v789 = vshll.u32 %v735, 16
        %v791 = vrot.slane %v789, 7
        %v792 = vsel %vm750, %v787, %v791
        %v794 = vshrl.u32 %v742, 16
        %v796 = vrot.slane %v794, 6
        %v797 = vshll.u32 %v742, 16
        %v799 = vrot.slane %v797, 7
        %v800 = vor.u32 %v796, %v799
        %v801 = vrot.slane %v800, 2
        %v803 = vshll.u32 %v743, 16
        %v805 = vrot.slane %v803, 7
        %v806 = vsel %vm750, %v801, %v805
        %v807 = vcombine.low %v764, %v778
        %v808 = vcombine.low %v792, %v806
        %v810 = vunpack.c.l.s4 1983009808
        %v811 = vunpack.c.0.s8 %v810
        %v812 = vlaneseq
        %v813 = vshrl.u32 %v812, 7
        %v814 = vsub.s32 %v811, %v813
        %v815 = vrot.slane %v807, %v814
        %v817 = vunpack.c.l.s4 1983009808
        %v818 = vunpack.c.0.s8 %v817
        %v819 = vlaneseq
        %v820 = vshrl.u32 %v819, 7
        %v821 = vsub.s32 %v818, %v820
        %v822 = vrot.slane %v808, %v821
        %v823 = vcombine.low %v815, %v822
        %v828 = vunpack.c.l.b16 %v704
        %v829 = vunpack.c.l.b16 %v705
        %v830 = vunpack.c.l.b16 %v706
        %v831 = vunpack.c.l.b16 %v707
        %v832 = vpack.c.b16 %v829, %v828
        %v833 = vpack.c.b16 %v831, %v830
        %v837 = vsel %vm491, %v823, 0
        %839 = vmatprep.subr.bf16.mxu0 0
        %840 = vmatpush1.bf16.msra.mxu0 %v832
        %841 = vmatprep.subr.bf16.mxu0 0
        %842 = vmatpush1.bf16.msra.mxu0 %v833
        %843 = vmatprep.subr.bf16.mxu0 0
        %844 = vmatpush1.bf16.msra.mxu0 0
        %845 = vmatprep.subr.bf16.mxu0 0
        %846 = vmatpush1.bf16.msra.mxu0 0
        %847 = vmatprep.subr.bf16.mxu0 0
        %848 = vmatpush1.bf16.msra.mxu0 0
        %849 = vmatprep.subr.bf16.mxu0 0
        %850 = vmatpush1.bf16.msra.mxu0 0
        %851 = vmatprep.subr.bf16.mxu0 0
        %852 = vmatpush1.bf16.msra.mxu0 0
        %853 = vmatprep.subr.bf16.mxu0 0
        %854 = vmatpush1.bf16.msra.mxu0 0
        %855 = vmatprep.subr.bf16.mxu0 0
        %856 = vmatpush1.bf16.msra.mxu0 0
        %857 = vmatprep.subr.bf16.mxu0 0
        %858 = vmatpush1.bf16.msra.mxu0 0
        %859 = vmatprep.subr.bf16.mxu0 0
        %860 = vmatpush1.bf16.msra.mxu0 0
        %861 = vmatprep.subr.bf16.mxu0 0
        %862 = vmatpush1.bf16.msra.mxu0 0
        %863 = vmatprep.subr.bf16.mxu0 0
        %864 = vmatpush1.bf16.msra.mxu0 0
        %865 = vmatprep.subr.bf16.mxu0 0
        %866 = vmatpush1.bf16.msra.mxu0 0
        %867 = vmatprep.subr.bf16.mxu0 0
        %868 = vmatpush1.bf16.msra.mxu0 0
        %869 = vmatprep.subr.bf16.mxu0 0
        %870 = vmatpush1.bf16.msra.mxu0 0
        %871 = vmatprep.mubr.bf16.mxu0 0
        %872 = vmatmul.mubr.bf16.gmra.mrb[0].mxu0 %v837
        %v873 = vpop.f32.mrb[0].mxu0
        %v874 = vadd.f32 0.0, %v873
        %v875 = vpop.f32.mrb[0].mxu0
        %v876 = vpop.f32.mrb[0].mxu0
        %v877 = vadd.f32 0.0, %v876
        %v878 = vpop.f32.mrb[0].mxu0
        %879 = vdwg.mxu0
        %v882 = vcombine.high %v874, %v874
        %v883 = vcombine.high %v877, %v877
        %v886 = vadd.f32 %v693, %v874
        %v887 = vadd.f32 %v694, %v882
        %v888 = vadd.f32 %v695, %v877
        %v889 = vadd.f32 %v696, %v883
        %s890 = scalar_lea.vmem [#allocation8], 64
        %v891 = vld [vmem:[%s890] sm:$0xf]
        %v892 = vld [vmem:[%s890 + $0x4] sm:$0xf]
        %v893 = vld [vmem:[%s890 + $0x8] sm:$0xf]
        %v894 = vld [vmem:[%s890 + $0xc] sm:$0xf]
        %v897 = vunpack.c.l.s4 1983009808
        %v898 = vunpack.c.0.s8 %v897
        %v899 = vlaneseq
        %v900 = vshrl.u32 %v899, 7
        %v901 = vsub.s32 %v898, %v900
        %v902 = vrot.slane %v701, %v901
        %v903 = vcombine.high %v902, %v902
        %v905 = vshrl.u32 %v902, 16
        %v907 = vrot.slane %v905, 6
        %v908 = vshll.u32 %v902, 16
        %v910 = vrot.slane %v908, 7
        %v911 = vor.u32 %v907, %v910
        %v912 = vrot.slane %v911, 2
        %v914 = vshll.u32 %v903, 16
        %v916 = vrot.slane %v914, 7
        %v917 = vsel %vm750, %v912, %v916
        %v918 = vcombine.low %v778, %v792
        %v919 = vcombine.low %v806, %v917
        %v921 = vunpack.c.l.s4 1983009808
        %v922 = vunpack.c.0.s8 %v921
        %v923 = vlaneseq
        %v924 = vshrl.u32 %v923, 7
        %v925 = vsub.s32 %v922, %v924
        %v926 = vrot.slane %v918, %v925
        %v928 = vunpack.c.l.s4 1983009808
        %v929 = vunpack.c.0.s8 %v928
        %v930 = vlaneseq
        %v931 = vshrl.u32 %v930, 7
        %v932 = vsub.s32 %v929, %v931
        %v933 = vrot.slane %v919, %v932
        %v934 = vcombine.low %v926, %v933
        %v939 = vunpack.c.l.b16 %v891
        %v940 = vunpack.c.l.b16 %v892
        %v941 = vunpack.c.l.b16 %v893
        %v942 = vunpack.c.l.b16 %v894
        %v943 = vpack.c.b16 %v940, %v939
        %v944 = vpack.c.b16 %v942, %v941
        %v948 = vsel %vm491, %v934, 0
        %950 = vmatprep.subr.bf16.mxu0 0
        %951 = vmatpush1.bf16.msra.mxu0 %v943
        %952 = vmatprep.subr.bf16.mxu0 0
        %953 = vmatpush1.bf16.msra.mxu0 %v944
        %954 = vmatprep.subr.bf16.mxu0 0
        %955 = vmatpush1.bf16.msra.mxu0 0
        %956 = vmatprep.subr.bf16.mxu0 0
        %957 = vmatpush1.bf16.msra.mxu0 0
        %958 = vmatprep.subr.bf16.mxu0 0
        %959 = vmatpush1.bf16.msra.mxu0 0
        %960 = vmatprep.subr.bf16.mxu0 0
        %961 = vmatpush1.bf16.msra.mxu0 0
        %962 = vmatprep.subr.bf16.mxu0 0
        %963 = vmatpush1.bf16.msra.mxu0 0
        %964 = vmatprep.subr.bf16.mxu0 0
        %965 = vmatpush1.bf16.msra.mxu0 0
        %966 = vmatprep.subr.bf16.mxu0 0
        %967 = vmatpush1.bf16.msra.mxu0 0
        %968 = vmatprep.subr.bf16.mxu0 0
        %969 = vmatpush1.bf16.msra.mxu0 0
        %970 = vmatprep.subr.bf16.mxu0 0
        %971 = vmatpush1.bf16.msra.mxu0 0
        %972 = vmatprep.subr.bf16.mxu0 0
        %973 = vmatpush1.bf16.msra.mxu0 0
        %974 = vmatprep.subr.bf16.mxu0 0
        %975 = vmatpush1.bf16.msra.mxu0 0
        %976 = vmatprep.subr.bf16.mxu0 0
        %977 = vmatpush1.bf16.msra.mxu0 0
        %978 = vmatprep.subr.bf16.mxu0 0
        %979 = vmatpush1.bf16.msra.mxu0 0
        %980 = vmatprep.subr.bf16.mxu0 0
        %981 = vmatpush1.bf16.msra.mxu0 0
        %982 = vmatprep.mubr.bf16.mxu0 0
        %983 = vmatmul.mubr.bf16.gmra.mrb[0].mxu0 %v948
        %v984 = vpop.f32.mrb[0].mxu0
        %v985 = vadd.f32 0.0, %v984
        %v986 = vpop.f32.mrb[0].mxu0
        %v987 = vpop.f32.mrb[0].mxu0
        %v988 = vadd.f32 0.0, %v987
        %v989 = vpop.f32.mrb[0].mxu0
        %990 = vdwg.mxu0
        %v993 = vcombine.high %v985, %v985
        %v994 = vcombine.high %v988, %v988
        %v997 = vadd.f32 %v886, %v985
        %v998 = vadd.f32 %v887, %v993
        %v999 = vadd.f32 %v888, %v988
        %v1000 = vadd.f32 %v889, %v994
        %s1001 = scalar_lea.vmem [#allocation8], 112
        %v1002 = vld [vmem:[%s1001] sm:$0xf]
        %v1003 = vld [vmem:[%s1001 + $0x4] sm:$0xf]
        %v1004 = vld [vmem:[%s1001 + $0x8] sm:$0xf]
        %v1005 = vld [vmem:[%s1001 + $0xc] sm:$0xf]
        %v1008 = vunpack.c.l.s4 1983009808
        %v1009 = vunpack.c.0.s8 %v1008
        %v1010 = vlaneseq
        %v1011 = vshrl.u32 %v1010, 7
        %v1012 = vsub.s32 %v1009, %v1011
        %v1013 = vrot.slane %v702, %v1012
        %v1014 = vcombine.high %v1013, %v1013
        %v1016 = vshrl.u32 %v1013, 16
        %v1018 = vrot.slane %v1016, 6
        %v1019 = vshll.u32 %v1013, 16
        %v1021 = vrot.slane %v1019, 7
        %v1022 = vor.u32 %v1018, %v1021
        %v1023 = vrot.slane %v1022, 2
        %v1025 = vshll.u32 %v1014, 16
        %v1027 = vrot.slane %v1025, 7
        %v1028 = vsel %vm750, %v1023, %v1027
        %v1029 = vcombine.low %v917, %v1028
        %v1031 = vunpack.c.l.s4 1983009808
        %v1032 = vunpack.c.0.s8 %v1031
        %v1033 = vlaneseq
        %v1034 = vshrl.u32 %v1033, 7
        %v1035 = vsub.s32 %v1032, %v1034
        %v1036 = vrot.slane %v1029, %v1035
        %v1037 = vcombine.low %v822, %v1036
        %v1042 = vunpack.c.l.b16 %v1002
        %v1043 = vunpack.c.l.b16 %v1003
        %v1044 = vunpack.c.l.b16 %v1004
        %v1045 = vunpack.c.l.b16 %v1005
        %v1046 = vpack.c.b16 %v1043, %v1042
        %v1047 = vpack.c.b16 %v1045, %v1044
        %v1051 = vsel %vm491, %v1037, 0
        %1053 = vmatprep.subr.bf16.mxu0 0
        %1054 = vmatpush1.bf16.msra.mxu0 %v1046
        %1055 = vmatprep.subr.bf16.mxu0 0
        %1056 = vmatpush1.bf16.msra.mxu0 %v1047
        %1057 = vmatprep.subr.bf16.mxu0 0
        %1058 = vmatpush1.bf16.msra.mxu0 0
        %1059 = vmatprep.subr.bf16.mxu0 0
        %1060 = vmatpush1.bf16.msra.mxu0 0
        %1061 = vmatprep.subr.bf16.mxu0 0
        %1062 = vmatpush1.bf16.msra.mxu0 0
        %1063 = vmatprep.subr.bf16.mxu0 0
        %1064 = vmatpush1.bf16.msra.mxu0 0
        %1065 = vmatprep.subr.bf16.mxu0 0
        %1066 = vmatpush1.bf16.msra.mxu0 0
        %1067 = vmatprep.subr.bf16.mxu0 0
        %1068 = vmatpush1.bf16.msra.mxu0 0
        %1069 = vmatprep.subr.bf16.mxu0 0
        %1070 = vmatpush1.bf16.msra.mxu0 0
        %1071 = vmatprep.subr.bf16.mxu0 0
        %1072 = vmatpush1.bf16.msra.mxu0 0
        %1073 = vmatprep.subr.bf16.mxu0 0
        %1074 = vmatpush1.bf16.msra.mxu0 0
        %1075 = vmatprep.subr.bf16.mxu0 0
        %1076 = vmatpush1.bf16.msra.mxu0 0
        %1077 = vmatprep.subr.bf16.mxu0 0
        %1078 = vmatpush1.bf16.msra.mxu0 0
        %1079 = vmatprep.subr.bf16.mxu0 0
        %1080 = vmatpush1.bf16.msra.mxu0 0
        %1081 = vmatprep.subr.bf16.mxu0 0
        %1082 = vmatpush1.bf16.msra.mxu0 0
        %1083 = vmatprep.subr.bf16.mxu0 0
        %1084 = vmatpush1.bf16.msra.mxu0 0
        %1085 = vmatprep.mubr.bf16.mxu0 0
        %1086 = vmatmul.mubr.bf16.gmra.mrb[0].mxu0 %v1051
        %v1087 = vpop.f32.mrb[0].mxu0
        %v1088 = vadd.f32 0.0, %v1087
        %v1089 = vpop.f32.mrb[0].mxu0
        %v1090 = vpop.f32.mrb[0].mxu0
        %v1091 = vadd.f32 0.0, %v1090
        %v1092 = vpop.f32.mrb[0].mxu0
        %1093 = vdwg.mxu0
        %v1096 = vcombine.high %v1088, %v1088
        %v1097 = vcombine.high %v1091, %v1091
        %v1100 = vadd.f32 %v997, %v1088
        %v1101 = vadd.f32 %v998, %v1096
        %v1102 = vadd.f32 %v999, %v1091
        %v1103 = vadd.f32 %v1000, %v1097
        %v1104 = vld [vmem:[#allocation2] sm:$0x6]
        %v1105 = vld [vmem:[#allocation2 + $0x4] sm:$0x6]
        %v1106 = vld [vmem:[#allocation2 + $0x8] sm:$0x6]
        %v1107 = vld [vmem:[#allocation2 + $0xc] sm:$0x6]
        %v1108 = vld [vmem:[#allocation2 + $0x10] sm:$0x6]
        %v1109 = vld [vmem:[#allocation2 + $0x14] sm:$0x6]
        %s1110 = scalar_lea.vmem [#allocation8], 32
        %v1111 = vld [vmem:[%s1110] sm:$0xf]
        %v1112 = vld [vmem:[%s1110 + $0x4] sm:$0xf]
        %v1113 = vld [vmem:[%s1110 + $0x8] sm:$0xf]
        %v1114 = vld [vmem:[%s1110 + $0xc] sm:$0xf]
        %v1120 = vunpack.c.l.s4 1983009808
        %v1121 = vunpack.c.0.s8 %v1120
        %v1122 = vlaneseq
        %v1123 = vshrl.u32 %v1122, 7
        %v1124 = vsub.s32 %v1121, %v1123
        %v1125 = vrot.slane %v1104, %v1124
        %v1126 = vcombine.high %v1125, %v1125
        %v1128 = vunpack.c.l.s4 1983009808
        %v1129 = vunpack.c.0.s8 %v1128
        %v1130 = vlaneseq
        %v1131 = vshrl.u32 %v1130, 7
        %v1132 = vsub.s32 %v1129, %v1131
        %v1133 = vrot.slane %v1105, %v1132
        %v1134 = vcombine.high %v1133, %v1133
        %v1136 = vunpack.c.l.s4 1983009808
        %v1137 = vunpack.c.0.s8 %v1136
        %v1138 = vlaneseq
        %v1139 = vshrl.u32 %v1138, 7
        %v1140 = vsub.s32 %v1137, %v1139
        %v1141 = vrot.slane %v1106, %v1140
        %v1142 = vcombine.high %v1141, %v1141
        %v1144 = vunpack.c.l.s4 1983009808
        %v1145 = vunpack.c.0.s8 %v1144
        %v1146 = vlaneseq
        %v1147 = vshrl.u32 %v1146, 7
        %v1148 = vsub.s32 %v1145, %v1147
        %v1149 = vrot.slane %v1107, %v1148
        %v1150 = vcombine.high %v1149, %v1149
        %vm1151 = vcmask 1040384
        %vm1152 = vcmask 1042434
        %vm1153 = vmor %vm1151, %vm1152
        %vm1154 = vcmask 1044484
        %vm1155 = vmor %vm1153, %vm1154
        %vm1156 = vcmask 1046534
        %vm1157 = vmor %vm1155, %vm1156
        %v1158 = vrot.slane %v1125, 7
        %v1159 = vrot.slane %v1158, 2
        %v1160 = vrot.slane %v1126, 7
        %v1161 = vsel %vm1157, %v1159, %v1160
        %v1162 = vrot.slane %v1133, 7
        %v1163 = vrot.slane %v1162, 2
        %v1164 = vrot.slane %v1134, 7
        %v1165 = vsel %vm1157, %v1163, %v1164
        %v1166 = vrot.slane %v1141, 7
        %v1167 = vrot.slane %v1166, 2
        %v1168 = vrot.slane %v1142, 7
        %v1169 = vsel %vm1157, %v1167, %v1168
        %v1170 = vrot.slane %v1149, 7
        %v1171 = vrot.slane %v1170, 2
        %v1172 = vrot.slane %v1150, 7
        %v1173 = vsel %vm1157, %v1171, %v1172
        %v1174 = vcombine.low %v1161, %v1165
        %v1175 = vcombine.low %v1169, %v1173
        %v1177 = vunpack.c.l.s4 1983009808
        %v1178 = vunpack.c.0.s8 %v1177
        %v1179 = vlaneseq
        %v1180 = vshrl.u32 %v1179, 7
        %v1181 = vsub.s32 %v1178, %v1180
        %v1182 = vrot.slane %v1174, %v1181
        %v1184 = vunpack.c.l.s4 1983009808
        %v1185 = vunpack.c.0.s8 %v1184
        %v1186 = vlaneseq
        %v1187 = vshrl.u32 %v1186, 7
        %v1188 = vsub.s32 %v1185, %v1187
        %v1189 = vrot.slane %v1175, %v1188
        %v1190 = vcombine.low %v1182, %v1189
        %v1195 = vunpack.c.l.b16 %v1111
        %v1196 = vunpack.c.l.b16 %v1112
        %v1197 = vunpack.c.l.b16 %v1113
        %v1198 = vunpack.c.l.b16 %v1114
        %v1199 = vpack.c.b16 %v1196, %v1195
        %v1200 = vpack.c.b16 %v1198, %v1197
        %v1204 = vsel %vm491, %v1190, 0
        %1206 = vmatprep.subr.bf16.mxu0 0
        %1207 = vmatpush1.bf16.msra.mxu0 %v1199
        %1208 = vmatprep.subr.bf16.mxu0 0
        %1209 = vmatpush1.bf16.msra.mxu0 %v1200
        %1210 = vmatprep.subr.bf16.mxu0 0
        %1211 = vmatpush1.bf16.msra.mxu0 0
        %1212 = vmatprep.subr.bf16.mxu0 0
        %1213 = vmatpush1.bf16.msra.mxu0 0
        %1214 = vmatprep.subr.bf16.mxu0 0
        %1215 = vmatpush1.bf16.msra.mxu0 0
        %1216 = vmatprep.subr.bf16.mxu0 0
        %1217 = vmatpush1.bf16.msra.mxu0 0
        %1218 = vmatprep.subr.bf16.mxu0 0
        %1219 = vmatpush1.bf16.msra.mxu0 0
        %1220 = vmatprep.subr.bf16.mxu0 0
        %1221 = vmatpush1.bf16.msra.mxu0 0
        %1222 = vmatprep.subr.bf16.mxu0 0
        %1223 = vmatpush1.bf16.msra.mxu0 0
        %1224 = vmatprep.subr.bf16.mxu0 0
        %1225 = vmatpush1.bf16.msra.mxu0 0
        %1226 = vmatprep.subr.bf16.mxu0 0
        %1227 = vmatpush1.bf16.msra.mxu0 0
        %1228 = vmatprep.subr.bf16.mxu0 0
        %1229 = vmatpush1.bf16.msra.mxu0 0
        %1230 = vmatprep.subr.bf16.mxu0 0
        %1231 = vmatpush1.bf16.msra.mxu0 0
        %1232 = vmatprep.subr.bf16.mxu0 0
        %1233 = vmatpush1.bf16.msra.mxu0 0
        %1234 = vmatprep.subr.bf16.mxu0 0
        %1235 = vmatpush1.bf16.msra.mxu0 0
        %1236 = vmatprep.subr.bf16.mxu0 0
        %1237 = vmatpush1.bf16.msra.mxu0 0
        %1238 = vmatprep.mubr.bf16.mxu0 0
        %1239 = vmatmul.mubr.bf16.gmra.mrb[0].mxu0 %v1204
        %v1240 = vpop.f32.mrb[0].mxu0
        %v1241 = vadd.f32 0.0, %v1240
        %v1242 = vpop.f32.mrb[0].mxu0
        %v1243 = vpop.f32.mrb[0].mxu0
        %v1244 = vadd.f32 0.0, %v1243
        %v1245 = vpop.f32.mrb[0].mxu0
        %1246 = vdwg.mxu0
        %v1249 = vcombine.high %v1241, %v1241
        %v1250 = vcombine.high %v1244, %v1244
        %v1253 = vadd.f32 %v1100, %v1241
        %v1254 = vadd.f32 %v1101, %v1249
        %v1255 = vadd.f32 %v1102, %v1244
        %v1256 = vadd.f32 %v1103, %v1250
        %s1257 = scalar_lea.vmem [#allocation8], 80
        %v1258 = vld [vmem:[%s1257] sm:$0xf]
        %v1259 = vld [vmem:[%s1257 + $0x4] sm:$0xf]
        %v1260 = vld [vmem:[%s1257 + $0x8] sm:$0xf]
        %v1261 = vld [vmem:[%s1257 + $0xc] sm:$0xf]
        %v1264 = vunpack.c.l.s4 1983009808
        %v1265 = vunpack.c.0.s8 %v1264
        %v1266 = vlaneseq
        %v1267 = vshrl.u32 %v1266, 7
        %v1268 = vsub.s32 %v1265, %v1267
        %v1269 = vrot.slane %v1108, %v1268
        %v1270 = vcombine.high %v1269, %v1269
        %v1271 = vrot.slane %v1269, 7
        %v1272 = vrot.slane %v1271, 2
        %v1273 = vrot.slane %v1270, 7
        %v1274 = vsel %vm1157, %v1272, %v1273
        %v1275 = vcombine.low %v1165, %v1169
        %v1276 = vcombine.low %v1173, %v1274
        %v1278 = vunpack.c.l.s4 1983009808
        %v1279 = vunpack.c.0.s8 %v1278
        %v1280 = vlaneseq
        %v1281 = vshrl.u32 %v1280, 7
        %v1282 = vsub.s32 %v1279, %v1281
        %v1283 = vrot.slane %v1275, %v1282
        %v1285 = vunpack.c.l.s4 1983009808
        %v1286 = vunpack.c.0.s8 %v1285
        %v1287 = vlaneseq
        %v1288 = vshrl.u32 %v1287, 7
        %v1289 = vsub.s32 %v1286, %v1288
        %v1290 = vrot.slane %v1276, %v1289
        %v1291 = vcombine.low %v1283, %v1290
        %v1296 = vunpack.c.l.b16 %v1258
        %v1297 = vunpack.c.l.b16 %v1259
        %v1298 = vunpack.c.l.b16 %v1260
        %v1299 = vunpack.c.l.b16 %v1261
        %v1300 = vpack.c.b16 %v1297, %v1296
        %v1301 = vpack.c.b16 %v1299, %v1298
        %v1305 = vsel %vm491, %v1291, 0
        %1307 = vmatprep.subr.bf16.mxu0 0
        %1308 = vmatpush1.bf16.msra.mxu0 %v1300
        %1309 = vmatprep.subr.bf16.mxu0 0
        %1310 = vmatpush1.bf16.msra.mxu0 %v1301
        %1311 = vmatprep.subr.bf16.mxu0 0
        %1312 = vmatpush1.bf16.msra.mxu0 0
        %1313 = vmatprep.subr.bf16.mxu0 0
        %1314 = vmatpush1.bf16.msra.mxu0 0
        %1315 = vmatprep.subr.bf16.mxu0 0
        %1316 = vmatpush1.bf16.msra.mxu0 0
        %1317 = vmatprep.subr.bf16.mxu0 0
        %1318 = vmatpush1.bf16.msra.mxu0 0
        %1319 = vmatprep.subr.bf16.mxu0 0
        %1320 = vmatpush1.bf16.msra.mxu0 0
        %1321 = vmatprep.subr.bf16.mxu0 0
        %1322 = vmatpush1.bf16.msra.mxu0 0
        %1323 = vmatprep.subr.bf16.mxu0 0
        %1324 = vmatpush1.bf16.msra.mxu0 0
        %1325 = vmatprep.subr.bf16.mxu0 0
        %1326 = vmatpush1.bf16.msra.mxu0 0
        %1327 = vmatprep.subr.bf16.mxu0 0
        %1328 = vmatpush1.bf16.msra.mxu0 0
        %1329 = vmatprep.subr.bf16.mxu0 0
        %1330 = vmatpush1.bf16.msra.mxu0 0
        %1331 = vmatprep.subr.bf16.mxu0 0
        %1332 = vmatpush1.bf16.msra.mxu0 0
        %1333 = vmatprep.subr.bf16.mxu0 0
        %1334 = vmatpush1.bf16.msra.mxu0 0
        %1335 = vmatprep.subr.bf16.mxu0 0
        %1336 = vmatpush1.bf16.msra.mxu0 0
        %1337 = vmatprep.subr.bf16.mxu0 0
        %1338 = vmatpush1.bf16.msra.mxu0 0
        %1339 = vmatprep.mubr.bf16.mxu0 0
        %1340 = vmatmul.mubr.bf16.gmra.mrb[0].mxu0 %v1305
        %v1341 = vpop.f32.mrb[0].mxu0
        %v1342 = vadd.f32 0.0, %v1341
        %v1343 = vpop.f32.mrb[0].mxu0
        %v1344 = vpop.f32.mrb[0].mxu0
        %v1345 = vadd.f32 0.0, %v1344
        %v1346 = vpop.f32.mrb[0].mxu0
        %1347 = vdwg.mxu0
        %v1350 = vcombine.high %v1342, %v1342
        %v1351 = vcombine.high %v1345, %v1345
        %v1354 = vadd.f32 %v1253, %v1342
        %v1355 = vadd.f32 %v1254, %v1350
        %v1356 = vadd.f32 %v1255, %v1345
        %v1357 = vadd.f32 %v1256, %v1351
        %s1358 = scalar_lea.vmem [#allocation8], 128
        %v1359 = vld [vmem:[%s1358] sm:$0xf]
        %v1360 = vld [vmem:[%s1358 + $0x4] sm:$0xf]
        %v1361 = vld [vmem:[%s1358 + $0x8] sm:$0xf]
        %v1362 = vld [vmem:[%s1358 + $0xc] sm:$0xf]
        %v1365 = vunpack.c.l.s4 1983009808
        %v1366 = vunpack.c.0.s8 %v1365
        %v1367 = vlaneseq
        %v1368 = vshrl.u32 %v1367, 7
        %v1369 = vsub.s32 %v1366, %v1368
        %v1370 = vrot.slane %v1109, %v1369
        %v1371 = vcombine.high %v1370, %v1370
        %v1372 = vrot.slane %v1370, 7
        %v1373 = vrot.slane %v1372, 2
        %v1374 = vrot.slane %v1371, 7
        %v1375 = vsel %vm1157, %v1373, %v1374
        %v1376 = vcombine.low %v1274, %v1375
        %v1378 = vunpack.c.l.s4 1983009808
        %v1379 = vunpack.c.0.s8 %v1378
        %v1380 = vlaneseq
        %v1381 = vshrl.u32 %v1380, 7
        %v1382 = vsub.s32 %v1379, %v1381
        %v1383 = vrot.slane %v1376, %v1382
        %v1384 = vcombine.low %v1189, %v1383
        %v1389 = vunpack.c.l.b16 %v1359
        %v1390 = vunpack.c.l.b16 %v1360
        %v1391 = vunpack.c.l.b16 %v1361
        %v1392 = vunpack.c.l.b16 %v1362
        %v1393 = vpack.c.b16 %v1390, %v1389
        %v1394 = vpack.c.b16 %v1392, %v1391
        %v1398 = vsel %vm491, %v1384, 0
        %1400 = vmatprep.subr.bf16.mxu0 0
        %1401 = vmatpush1.bf16.msra.mxu0 %v1393
        %1402 = vmatprep.subr.bf16.mxu0 0
        %1403 = vmatpush1.bf16.msra.mxu0 %v1394
        %1404 = vmatprep.subr.bf16.mxu0 0
        %1405 = vmatpush1.bf16.msra.mxu0 0
        %1406 = vmatprep.subr.bf16.mxu0 0
        %1407 = vmatpush1.bf16.msra.mxu0 0
        %1408 = vmatprep.subr.bf16.mxu0 0
        %1409 = vmatpush1.bf16.msra.mxu0 0
        %1410 = vmatprep.subr.bf16.mxu0 0
        %1411 = vmatpush1.bf16.msra.mxu0 0
        %1412 = vmatprep.subr.bf16.mxu0 0
        %1413 = vmatpush1.bf16.msra.mxu0 0
        %1414 = vmatprep.subr.bf16.mxu0 0
        %1415 = vmatpush1.bf16.msra.mxu0 0
        %1416 = vmatprep.subr.bf16.mxu0 0
        %1417 = vmatpush1.bf16.msra.mxu0 0
        %1418 = vmatprep.subr.bf16.mxu0 0
        %1419 = vmatpush1.bf16.msra.mxu0 0
        %1420 = vmatprep.subr.bf16.mxu0 0
        %1421 = vmatpush1.bf16.msra.mxu0 0
        %1422 = vmatprep.subr.bf16.mxu0 0
        %1423 = vmatpush1.bf16.msra.mxu0 0
        %1424 = vmatprep.subr.bf16.mxu0 0
        %1425 = vmatpush1.bf16.msra.mxu0 0
        %1426 = vmatprep.subr.bf16.mxu0 0
        %1427 = vmatpush1.bf16.msra.mxu0 0
        %1428 = vmatprep.subr.bf16.mxu0 0
        %1429 = vmatpush1.bf16.msra.mxu0 0
        %1430 = vmatprep.subr.bf16.mxu0 0
        %1431 = vmatpush1.bf16.msra.mxu0 0
        %1432 = vmatprep.mubr.bf16.mxu0 0
        %1433 = vmatmul.mubr.bf16.gmra.mrb[0].mxu0 %v1398
        %v1434 = vpop.f32.mrb[0].mxu0
        %v1435 = vadd.f32 0.0, %v1434
        %v1436 = vpop.f32.mrb[0].mxu0
        %v1437 = vpop.f32.mrb[0].mxu0
        %v1438 = vadd.f32 0.0, %v1437
        %v1439 = vpop.f32.mrb[0].mxu0
        %1440 = vdwg.mxu0
        %v1443 = vcombine.high %v1435, %v1435
        %v1444 = vcombine.high %v1438, %v1438
        %v1447 = vadd.f32 %v1354, %v1435
        %v1448 = vadd.f32 %v1355, %v1443
        %v1449 = vadd.f32 %v1356, %v1438
        %v1450 = vadd.f32 %v1357, %v1444
        %v1451 = vld [vmem:[%s272] sm:$0x3]
        %v1452 = vld [vmem:[%s272 + $0x2] sm:$0x3]
        %v1453 = vld [vmem:[%s272 + $0x4] sm:$0x3]
        %v1454 = vld [vmem:[%s272 + $0x6] sm:$0x3]
        %v1460 = vunpack.c.l.s4 1983009808
        %v1461 = vunpack.c.0.s8 %v1460
        %v1462 = vlaneseq
        %v1463 = vshrl.u32 %v1462, 7
        %v1464 = vsub.s32 %v1461, %v1463
        %v1465 = vrot.slane %v1451, %v1464
        %v1467 = vunpack.c.l.s4 1983009808
        %v1468 = vunpack.c.0.s8 %v1467
        %v1469 = vlaneseq
        %v1470 = vshrl.u32 %v1469, 7
        %v1471 = vsub.s32 %v1468, %v1470
        %v1472 = vrot.slane %v1452, %v1471
        %v1474 = vunpack.c.l.s4 1983009808
        %v1475 = vunpack.c.0.s8 %v1474
        %v1476 = vlaneseq
        %v1477 = vshrl.u32 %v1476, 7
        %v1478 = vsub.s32 %v1475, %v1477
        %v1479 = vrot.slane %v1453, %v1478
        %v1481 = vunpack.c.l.s4 1983009808
        %v1482 = vunpack.c.0.s8 %v1481
        %v1483 = vlaneseq
        %v1484 = vshrl.u32 %v1483, 7
        %v1485 = vsub.s32 %v1482, %v1484
        %v1486 = vrot.slane %v1454, %v1485
        %v1488 = vshrl.u32 %v1465, 16
        %v1490 = vrot.slane %v1488, 7
        %v1491 = vshll.u32 %v1465, 16
        %v1493 = vor.u32 %v1490, %v1491
        %v1495 = vshrl.u32 %v1472, 16
        %v1497 = vrot.slane %v1495, 7
        %v1498 = vshll.u32 %v1472, 16
        %v1500 = vor.u32 %v1497, %v1498
        %v1502 = vshrl.u32 %v1479, 16
        %v1504 = vrot.slane %v1502, 7
        %v1505 = vshll.u32 %v1479, 16
        %v1507 = vor.u32 %v1504, %v1505
        %v1509 = vshrl.u32 %v1486, 16
        %v1511 = vrot.slane %v1509, 7
        %v1512 = vshll.u32 %v1486, 16
        %v1514 = vor.u32 %v1511, %v1512
        %vm1519 = vcmask 124928
        %vm1520 = vmand %vm1519, %vm429
        %v1521 = vld [vmem:[%s427] sm:$0x7]
        %v1522 = vsel %vm1520, %v1493, %v1521
        %1523 = vst [vmem:[%s427] sm:$0x7] %v1522
        %v1524 = vld [vmem:[%s427 + $0x4] sm:$0x7]
        %v1525 = vsel %vm1520, %v1500, %v1524
        %1526 = vst [vmem:[%s427 + $0x4] sm:$0x7] %v1525
        %v1527 = vld [vmem:[%s427 + $0x8] sm:$0x7]
        %v1528 = vsel %vm1520, %v1507, %v1527
        %1529 = vst [vmem:[%s427 + $0x8] sm:$0x7] %v1528
        %v1530 = vld [vmem:[%s427 + $0xc] sm:$0x7]
        %v1531 = vsel %vm1520, %v1514, %v1530
        %1532 = vst [vmem:[%s427 + $0xc] sm:$0x7] %v1531
        %v1533 = vld [vmem:[#allocation2] sm:$0x3]
        %v1534 = vld [vmem:[#allocation2 + $0x4] sm:$0x3]
        %v1535 = vld [vmem:[#allocation2 + $0x8] sm:$0x3]
        %v1536 = vld [vmem:[#allocation2 + $0xc] sm:$0x3]
        %v1537 = vld [vmem:[#allocation2 + $0x10] sm:$0x3]
        %v1538 = vld [vmem:[#allocation2 + $0x14] sm:$0x3]
        %v1539 = vld [vmem:[#allocation9] sm:$0xf]
        %v1540 = vld [vmem:[#allocation9 + $0x4] sm:$0xf]
        %v1545 = vcombine.low %v1533, %v1534
        %v1546 = vcombine.low %v1535, %v1536
        %v1548 = vunpack.c.l.s4 1983009808
        %v1549 = vunpack.c.0.s8 %v1548
        %v1550 = vlaneseq
        %v1551 = vshrl.u32 %v1550, 7
        %v1552 = vsub.s32 %v1549, %v1551
        %v1553 = vrot.slane %v1545, %v1552
        %v1555 = vunpack.c.l.s4 1983009808
        %v1556 = vunpack.c.0.s8 %v1555
        %v1557 = vlaneseq
        %v1558 = vshrl.u32 %v1557, 7
        %v1559 = vsub.s32 %v1556, %v1558
        %v1560 = vrot.slane %v1546, %v1559
        %v1561 = vcombine.low %v1553, %v1560
        %v1564 = vunpack.c.l.b16 %v1539
        %v1565 = vunpack.c.l.b16 %v1540
        %v1566 = vpack.c.b16 %v1565, %v1564
        %vm1568 = vcmask 130048
        %v1570 = vsel %vm1568, %v1561, 0
        %1572 = vmatprep.subr.bf16.mxu0 0
        %1573 = vmatpush1.bf16.msra.mxu0 %v1566
        %1574 = vmatprep.subr.bf16.mxu0 0
        %1575 = vmatpush1.bf16.msra.mxu0 0
        %1576 = vmatprep.subr.bf16.mxu0 0
        %1577 = vmatpush1.bf16.msra.mxu0 0
        %1578 = vmatprep.subr.bf16.mxu0 0
        %1579 = vmatpush1.bf16.msra.mxu0 0
        %1580 = vmatprep.subr.bf16.mxu0 0
        %1581 = vmatpush1.bf16.msra.mxu0 0
        %1582 = vmatprep.subr.bf16.mxu0 0
        %1583 = vmatpush1.bf16.msra.mxu0 0
        %1584 = vmatprep.subr.bf16.mxu0 0
        %1585 = vmatpush1.bf16.msra.mxu0 0
        %1586 = vmatprep.subr.bf16.mxu0 0
        %1587 = vmatpush1.bf16.msra.mxu0 0
        %1588 = vmatprep.subr.bf16.mxu0 0
        %1589 = vmatpush1.bf16.msra.mxu0 0
        %1590 = vmatprep.subr.bf16.mxu0 0
        %1591 = vmatpush1.bf16.msra.mxu0 0
        %1592 = vmatprep.subr.bf16.mxu0 0
        %1593 = vmatpush1.bf16.msra.mxu0 0
        %1594 = vmatprep.subr.bf16.mxu0 0
        %1595 = vmatpush1.bf16.msra.mxu0 0
        %1596 = vmatprep.subr.bf16.mxu0 0
        %1597 = vmatpush1.bf16.msra.mxu0 0
        %1598 = vmatprep.subr.bf16.mxu0 0
        %1599 = vmatpush1.bf16.msra.mxu0 0
        %1600 = vmatprep.subr.bf16.mxu0 0
        %1601 = vmatpush1.bf16.msra.mxu0 0
        %1602 = vmatprep.subr.bf16.mxu0 0
        %1603 = vmatpush1.bf16.msra.mxu0 0
        %1604 = vmatprep.mubr.bf16.mxu0 0
        %1605 = vmatmul.mubr.bf16.gmra.mrb[0].mxu0 %v1570
        %v1606 = vpop.f32.mrb[0].mxu0
        %v1607 = vadd.f32 0.0, %v1606
        %v1608 = vpop.f32.mrb[0].mxu0
        %v1609 = vpop.f32.mrb[0].mxu0
        %v1610 = vadd.f32 0.0, %v1609
        %v1611 = vpop.f32.mrb[0].mxu0
        %1612 = vdwg.mxu0
        %v1615 = vcombine.high %v1607, %v1607
        %v1616 = vcombine.high %v1610, %v1610
        %v1619 = vadd.f32 %v1447, %v1607
        %v1620 = vadd.f32 %v1448, %v1615
        %v1621 = vadd.f32 %v1449, %v1610
        %v1622 = vadd.f32 %v1450, %v1616
        %s1623 = scalar_lea.vmem [#allocation9], 24
        %v1624 = vld [vmem:[%s1623] sm:$0xf]
        %v1625 = vld [vmem:[%s1623 + $0x4] sm:$0xf]
        %v1627 = vcombine.low %v1534, %v1535
        %v1628 = vcombine.low %v1536, %v1537
        %v1630 = vunpack.c.l.s4 1983009808
        %v1631 = vunpack.c.0.s8 %v1630
        %v1632 = vlaneseq
        %v1633 = vshrl.u32 %v1632, 7
        %v1634 = vsub.s32 %v1631, %v1633
        %v1635 = vrot.slane %v1627, %v1634
        %v1637 = vunpack.c.l.s4 1983009808
        %v1638 = vunpack.c.0.s8 %v1637
        %v1639 = vlaneseq
        %v1640 = vshrl.u32 %v1639, 7
        %v1641 = vsub.s32 %v1638, %v1640
        %v1642 = vrot.slane %v1628, %v1641
        %v1643 = vcombine.low %v1635, %v1642
        %v1646 = vunpack.c.l.b16 %v1624
        %v1647 = vunpack.c.l.b16 %v1625
        %v1648 = vpack.c.b16 %v1647, %v1646
        %v1651 = vsel %vm1568, %v1643, 0
        %1653 = vmatprep.subr.bf16.mxu0 0
        %1654 = vmatpush1.bf16.msra.mxu0 %v1648
        %1655 = vmatprep.subr.bf16.mxu0 0
        %1656 = vmatpush1.bf16.msra.mxu0 0
        %1657 = vmatprep.subr.bf16.mxu0 0
        %1658 = vmatpush1.bf16.msra.mxu0 0
        %1659 = vmatprep.subr.bf16.mxu0 0
        %1660 = vmatpush1.bf16.msra.mxu0 0
        %1661 = vmatprep.subr.bf16.mxu0 0
        %1662 = vmatpush1.bf16.msra.mxu0 0
        %1663 = vmatprep.subr.bf16.mxu0 0
        %1664 = vmatpush1.bf16.msra.mxu0 0
        %1665 = vmatprep.subr.bf16.mxu0 0
        %1666 = vmatpush1.bf16.msra.mxu0 0
        %1667 = vmatprep.subr.bf16.mxu0 0
        %1668 = vmatpush1.bf16.msra.mxu0 0
        %1669 = vmatprep.subr.bf16.mxu0 0
        %1670 = vmatpush1.bf16.msra.mxu0 0
        %1671 = vmatprep.subr.bf16.mxu0 0
        %1672 = vmatpush1.bf16.msra.mxu0 0
        %1673 = vmatprep.subr.bf16.mxu0 0
        %1674 = vmatpush1.bf16.msra.mxu0 0
        %1675 = vmatprep.subr.bf16.mxu0 0
        %1676 = vmatpush1.bf16.msra.mxu0 0
        %1677 = vmatprep.subr.bf16.mxu0 0
        %1678 = vmatpush1.bf16.msra.mxu0 0
        %1679 = vmatprep.subr.bf16.mxu0 0
        %1680 = vmatpush1.bf16.msra.mxu0 0
        %1681 = vmatprep.subr.bf16.mxu0 0
        %1682 = vmatpush1.bf16.msra.mxu0 0
        %1683 = vmatprep.subr.bf16.mxu0 0
        %1684 = vmatpush1.bf16.msra.mxu0 0
        %1685 = vmatprep.mubr.bf16.mxu0 0
        %1686 = vmatmul.mubr.bf16.gmra.mrb[0].mxu0 %v1651
        %v1687 = vpop.f32.mrb[0].mxu0
        %v1688 = vadd.f32 0.0, %v1687
        %v1689 = vpop.f32.mrb[0].mxu0
        %v1690 = vpop.f32.mrb[0].mxu0
        %v1691 = vadd.f32 0.0, %v1690
        %v1692 = vpop.f32.mrb[0].mxu0
        %1693 = vdwg.mxu0
        %v1696 = vcombine.high %v1688, %v1688
        %v1697 = vcombine.high %v1691, %v1691
        %v1700 = vadd.f32 %v1619, %v1688
        %v1701 = vadd.f32 %v1620, %v1696
        %v1702 = vadd.f32 %v1621, %v1691
        %v1703 = vadd.f32 %v1622, %v1697
        %s1704 = scalar_lea.vmem [#allocation9], 48
        %v1705 = vld [vmem:[%s1704] sm:$0xf]
        %v1706 = vld [vmem:[%s1704 + $0x4] sm:$0xf]
        %v1708 = vcombine.low %v1537, %v1538
        %v1710 = vunpack.c.l.s4 1983009808
        %v1711 = vunpack.c.0.s8 %v1710
        %v1712 = vlaneseq
        %v1713 = vshrl.u32 %v1712, 7
        %v1714 = vsub.s32 %v1711, %v1713
        %v1715 = vrot.slane %v1708, %v1714
        %v1716 = vcombine.low %v1560, %v1715
        %v1719 = vunpack.c.l.b16 %v1705
        %v1720 = vunpack.c.l.b16 %v1706
        %v1721 = vpack.c.b16 %v1720, %v1719
        %v1724 = vsel %vm1568, %v1716, 0
        %1726 = vmatprep.subr.bf16.mxu0 0
        %1727 = vmatpush1.bf16.msra.mxu0 %v1721
        %1728 = vmatprep.subr.bf16.mxu0 0
        %1729 = vmatpush1.bf16.msra.mxu0 0
        %1730 = vmatprep.subr.bf16.mxu0 0
        %1731 = vmatpush1.bf16.msra.mxu0 0
        %1732 = vmatprep.subr.bf16.mxu0 0
        %1733 = vmatpush1.bf16.msra.mxu0 0
        %1734 = vmatprep.subr.bf16.mxu0 0
        %1735 = vmatpush1.bf16.msra.mxu0 0
        %1736 = vmatprep.subr.bf16.mxu0 0
        %1737 = vmatpush1.bf16.msra.mxu0 0
        %1738 = vmatprep.subr.bf16.mxu0 0
        %1739 = vmatpush1.bf16.msra.mxu0 0
        %1740 = vmatprep.subr.bf16.mxu0 0
        %1741 = vmatpush1.bf16.msra.mxu0 0
        %1742 = vmatprep.subr.bf16.mxu0 0
        %1743 = vmatpush1.bf16.msra.mxu0 0
        %1744 = vmatprep.subr.bf16.mxu0 0
        %1745 = vmatpush1.bf16.msra.mxu0 0
        %1746 = vmatprep.subr.bf16.mxu0 0
        %1747 = vmatpush1.bf16.msra.mxu0 0
        %1748 = vmatprep.subr.bf16.mxu0 0
        %1749 = vmatpush1.bf16.msra.mxu0 0
        %1750 = vmatprep.subr.bf16.mxu0 0
        %1751 = vmatpush1.bf16.msra.mxu0 0
        %1752 = vmatprep.subr.bf16.mxu0 0
        %1753 = vmatpush1.bf16.msra.mxu0 0
        %1754 = vmatprep.subr.bf16.mxu0 0
        %1755 = vmatpush1.bf16.msra.mxu0 0
        %1756 = vmatprep.subr.bf16.mxu0 0
        %1757 = vmatpush1.bf16.msra.mxu0 0
        %1758 = vmatprep.mubr.bf16.mxu0 0
        %1759 = vmatmul.mubr.bf16.gmra.mrb[0].mxu0 %v1724
        %v1760 = vpop.f32.mrb[0].mxu0
        %v1761 = vadd.f32 0.0, %v1760
        %v1762 = vpop.f32.mrb[0].mxu0
        %v1763 = vpop.f32.mrb[0].mxu0
        %v1764 = vadd.f32 0.0, %v1763
        %v1765 = vpop.f32.mrb[0].mxu0
        %1766 = vdwg.mxu0
        %v1769 = vcombine.high %v1761, %v1761
        %v1770 = vcombine.high %v1764, %v1764
        %v1773 = vadd.f32 %v1700, %v1761
        %v1774 = vadd.f32 %v1701, %v1769
        %v1775 = vadd.f32 %v1702, %v1764
        %v1776 = vadd.f32 %v1703, %v1770
        %v1777 = vld [vmem:[#allocation2] sm:$0x7]
        %v1778 = vld [vmem:[#allocation2 + $0x4] sm:$0x7]
        %v1779 = vld [vmem:[#allocation2 + $0x8] sm:$0x7]
        %v1780 = vld [vmem:[#allocation2 + $0xc] sm:$0x7]
        %v1781 = vld [vmem:[#allocation2 + $0x10] sm:$0x7]
        %v1782 = vld [vmem:[#allocation2 + $0x14] sm:$0x7]
        %s1783 = scalar_lea.vmem [#allocation9], 8
        %v1784 = vld [vmem:[%s1783] sm:$0xf]
        %v1785 = vld [vmem:[%s1783 + $0x4] sm:$0xf]
        %v1791 = vunpack.c.l.s4 1983009808
        %v1792 = vunpack.c.0.s8 %v1791
        %v1793 = vlaneseq
        %v1794 = vshrl.u32 %v1793, 7
        %v1795 = vsub.s32 %v1792, %v1794
        %v1796 = vrot.slane %v1777, %v1795
        %v1797 = vcombine.high %v1796, %v1796
        %v1799 = vunpack.c.l.s4 1983009808
        %v1800 = vunpack.c.0.s8 %v1799
        %v1801 = vlaneseq
        %v1802 = vshrl.u32 %v1801, 7
        %v1803 = vsub.s32 %v1800, %v1802
        %v1804 = vrot.slane %v1778, %v1803
        %v1805 = vcombine.high %v1804, %v1804
        %v1807 = vunpack.c.l.s4 1983009808
        %v1808 = vunpack.c.0.s8 %v1807
        %v1809 = vlaneseq
        %v1810 = vshrl.u32 %v1809, 7
        %v1811 = vsub.s32 %v1808, %v1810
        %v1812 = vrot.slane %v1779, %v1811
        %v1813 = vcombine.high %v1812, %v1812
        %v1815 = vunpack.c.l.s4 1983009808
        %v1816 = vunpack.c.0.s8 %v1815
        %v1817 = vlaneseq
        %v1818 = vshrl.u32 %v1817, 7
        %v1819 = vsub.s32 %v1816, %v1818
        %v1820 = vrot.slane %v1780, %v1819
        %v1821 = vcombine.high %v1820, %v1820
        %v1823 = vshrl.u32 %v1796, 16
        %v1825 = vrot.slane %v1823, 6
        %v1826 = vshll.u32 %v1796, 16
        %v1828 = vrot.slane %v1826, 7
        %v1829 = vor.u32 %v1825, %v1828
        %v1830 = vrot.slane %v1829, 2
        %v1832 = vshll.u32 %v1797, 16
        %v1834 = vrot.slane %v1832, 7
        %v1835 = vsel %vm750, %v1830, %v1834
        %v1837 = vshrl.u32 %v1804, 16
        %v1839 = vrot.slane %v1837, 6
        %v1840 = vshll.u32 %v1804, 16
        %v1842 = vrot.slane %v1840, 7
        %v1843 = vor.u32 %v1839, %v1842
        %v1844 = vrot.slane %v1843, 2
        %v1846 = vshll.u32 %v1805, 16
        %v1848 = vrot.slane %v1846, 7
        %v1849 = vsel %vm750, %v1844, %v1848
        %v1851 = vshrl.u32 %v1812, 16
        %v1853 = vrot.slane %v1851, 6
        %v1854 = vshll.u32 %v1812, 16
        %v1856 = vrot.slane %v1854, 7
        %v1857 = vor.u32 %v1853, %v1856
        %v1858 = vrot.slane %v1857, 2
        %v1860 = vshll.u32 %v1813, 16
        %v1862 = vrot.slane %v1860, 7
        %v1863 = vsel %vm750, %v1858, %v1862
        %v1865 = vshrl.u32 %v1820, 16
        %v1867 = vrot.slane %v1865, 6
        %v1868 = vshll.u32 %v1820, 16
        %v1870 = vrot.slane %v1868, 7
        %v1871 = vor.u32 %v1867, %v1870
        %v1872 = vrot.slane %v1871, 2
        %v1874 = vshll.u32 %v1821, 16
        %v1876 = vrot.slane %v1874, 7
        %v1877 = vsel %vm750, %v1872, %v1876
        %v1878 = vcombine.low %v1835, %v1849
        %v1879 = vcombine.low %v1863, %v1877
        %v1881 = vunpack.c.l.s4 1983009808
        %v1882 = vunpack.c.0.s8 %v1881
        %v1883 = vlaneseq
        %v1884 = vshrl.u32 %v1883, 7
        %v1885 = vsub.s32 %v1882, %v1884
        %v1886 = vrot.slane %v1878, %v1885
        %v1888 = vunpack.c.l.s4 1983009808
        %v1889 = vunpack.c.0.s8 %v1888
        %v1890 = vlaneseq
        %v1891 = vshrl.u32 %v1890, 7
        %v1892 = vsub.s32 %v1889, %v1891
        %v1893 = vrot.slane %v1879, %v1892
        %v1894 = vcombine.low %v1886, %v1893
        %v1897 = vunpack.c.l.b16 %v1784
        %v1898 = vunpack.c.l.b16 %v1785
        %v1899 = vpack.c.b16 %v1898, %v1897
        %v1902 = vsel %vm1568, %v1894, 0
        %1904 = vmatprep.subr.bf16.mxu0 0
        %1905 = vmatpush1.bf16.msra.mxu0 %v1899
        %1906 = vmatprep.subr.bf16.mxu0 0
        %1907 = vmatpush1.bf16.msra.mxu0 0
        %1908 = vmatprep.subr.bf16.mxu0 0
        %1909 = vmatpush1.bf16.msra.mxu0 0
        %1910 = vmatprep.subr.bf16.mxu0 0
        %1911 = vmatpush1.bf16.msra.mxu0 0
        %1912 = vmatprep.subr.bf16.mxu0 0
        %1913 = vmatpush1.bf16.msra.mxu0 0
        %1914 = vmatprep.subr.bf16.mxu0 0
        %1915 = vmatpush1.bf16.msra.mxu0 0
        %1916 = vmatprep.subr.bf16.mxu0 0
        %1917 = vmatpush1.bf16.msra.mxu0 0
        %1918 = vmatprep.subr.bf16.mxu0 0
        %1919 = vmatpush1.bf16.msra.mxu0 0
        %1920 = vmatprep.subr.bf16.mxu0 0
        %1921 = vmatpush1.bf16.msra.mxu0 0
        %1922 = vmatprep.subr.bf16.mxu0 0
        %1923 = vmatpush1.bf16.msra.mxu0 0
        %1924 = vmatprep.subr.bf16.mxu0 0
        %1925 = vmatpush1.bf16.msra.mxu0 0
        %1926 = vmatprep.subr.bf16.mxu0 0
        %1927 = vmatpush1.bf16.msra.mxu0 0
        %1928 = vmatprep.subr.bf16.mxu0 0
        %1929 = vmatpush1.bf16.msra.mxu0 0
        %1930 = vmatprep.subr.bf16.mxu0 0
        %1931 = vmatpush1.bf16.msra.mxu0 0
        %1932 = vmatprep.subr.bf16.mxu0 0
        %1933 = vmatpush1.bf16.msra.mxu0 0
        %1934 = vmatprep.subr.bf16.mxu0 0
        %1935 = vmatpush1.bf16.msra.mxu0 0
        %1936 = vmatprep.mubr.bf16.mxu0 0
        %1937 = vmatmul.mubr.bf16.gmra.mrb[0].mxu0 %v1902
        %v1938 = vpop.f32.mrb[0].mxu0
        %v1939 = vadd.f32 0.0, %v1938
        %v1940 = vpop.f32.mrb[0].mxu0
        %v1941 = vpop.f32.mrb[0].mxu0
        %v1942 = vadd.f32 0.0, %v1941
        %v1943 = vpop.f32.mrb[0].mxu0
        %1944 = vdwg.mxu0
        %v1947 = vcombine.high %v1939, %v1939
        %v1948 = vcombine.high %v1942, %v1942
        %v1951 = vadd.f32 %v1773, %v1939
        %v1952 = vadd.f32 %v1774, %v1947
        %v1953 = vadd.f32 %v1775, %v1942
        %v1954 = vadd.f32 %v1776, %v1948
        %s1955 = scalar_lea.vmem [#allocation9], 32
        %v1956 = vld [vmem:[%s1955] sm:$0xf]
        %v1957 = vld [vmem:[%s1955 + $0x4] sm:$0xf]
        %v1960 = vunpack.c.l.s4 1983009808
        %v1961 = vunpack.c.0.s8 %v1960
        %v1962 = vlaneseq
        %v1963 = vshrl.u32 %v1962, 7
        %v1964 = vsub.s32 %v1961, %v1963
        %v1965 = vrot.slane %v1781, %v1964
        %v1966 = vcombine.high %v1965, %v1965
        %v1968 = vshrl.u32 %v1965, 16
        %v1970 = vrot.slane %v1968, 6
        %v1971 = vshll.u32 %v1965, 16
        %v1973 = vrot.slane %v1971, 7
        %v1974 = vor.u32 %v1970, %v1973
        %v1975 = vrot.slane %v1974, 2
        %v1977 = vshll.u32 %v1966, 16
        %v1979 = vrot.slane %v1977, 7
        %v1980 = vsel %vm750, %v1975, %v1979
        %v1981 = vcombine.low %v1849, %v1863
        %v1982 = vcombine.low %v1877, %v1980
        %v1984 = vunpack.c.l.s4 1983009808
        %v1985 = vunpack.c.0.s8 %v1984
        %v1986 = vlaneseq
        %v1987 = vshrl.u32 %v1986, 7
        %v1988 = vsub.s32 %v1985, %v1987
        %v1989 = vrot.slane %v1981, %v1988
        %v1991 = vunpack.c.l.s4 1983009808
        %v1992 = vunpack.c.0.s8 %v1991
        %v1993 = vlaneseq
        %v1994 = vshrl.u32 %v1993, 7
        %v1995 = vsub.s32 %v1992, %v1994
        %v1996 = vrot.slane %v1982, %v1995
        %v1997 = vcombine.low %v1989, %v1996
        %v2000 = vunpack.c.l.b16 %v1956
        %v2001 = vunpack.c.l.b16 %v1957
        %v2002 = vpack.c.b16 %v2001, %v2000
        %v2005 = vsel %vm1568, %v1997, 0
        %2007 = vmatprep.subr.bf16.mxu0 0
        %2008 = vmatpush1.bf16.msra.mxu0 %v2002
        %2009 = vmatprep.subr.bf16.mxu0 0
        %2010 = vmatpush1.bf16.msra.mxu0 0
        %2011 = vmatprep.subr.bf16.mxu0 0
        %2012 = vmatpush1.bf16.msra.mxu0 0
        %2013 = vmatprep.subr.bf16.mxu0 0
        %2014 = vmatpush1.bf16.msra.mxu0 0
        %2015 = vmatprep.subr.bf16.mxu0 0
        %2016 = vmatpush1.bf16.msra.mxu0 0
        %2017 = vmatprep.subr.bf16.mxu0 0
        %2018 = vmatpush1.bf16.msra.mxu0 0
        %2019 = vmatprep.subr.bf16.mxu0 0
        %2020 = vmatpush1.bf16.msra.mxu0 0
        %2021 = vmatprep.subr.bf16.mxu0 0
        %2022 = vmatpush1.bf16.msra.mxu0 0
        %2023 = vmatprep.subr.bf16.mxu0 0
        %2024 = vmatpush1.bf16.msra.mxu0 0
        %2025 = vmatprep.subr.bf16.mxu0 0
        %2026 = vmatpush1.bf16.msra.mxu0 0
        %2027 = vmatprep.subr.bf16.mxu0 0
        %2028 = vmatpush1.bf16.msra.mxu0 0
        %2029 = vmatprep.subr.bf16.mxu0 0
        %2030 = vmatpush1.bf16.msra.mxu0 0
        %2031 = vmatprep.subr.bf16.mxu0 0
        %2032 = vmatpush1.bf16.msra.mxu0 0
        %2033 = vmatprep.subr.bf16.mxu0 0
        %2034 = vmatpush1.bf16.msra.mxu0 0
        %2035 = vmatprep.subr.bf16.mxu0 0
        %2036 = vmatpush1.bf16.msra.mxu0 0
        %2037 = vmatprep.subr.bf16.mxu0 0
        %2038 = vmatpush1.bf16.msra.mxu0 0
        %2039 = vmatprep.mubr.bf16.mxu0 0
        %2040 = vmatmul.mubr.bf16.gmra.mrb[0].mxu0 %v2005
        %v2041 = vpop.f32.mrb[0].mxu0
        %v2042 = vadd.f32 0.0, %v2041
        %v2043 = vpop.f32.mrb[0].mxu0
        %v2044 = vpop.f32.mrb[0].mxu0
        %v2045 = vadd.f32 0.0, %v2044
        %v2046 = vpop.f32.mrb[0].mxu0
        %2047 = vdwg.mxu0
        %v2050 = vcombine.high %v2042, %v2042
        %v2051 = vcombine.high %v2045, %v2045
        %v2054 = vadd.f32 %v1951, %v2042
        %v2055 = vadd.f32 %v1952, %v2050
        %v2056 = vadd.f32 %v1953, %v2045
        %v2057 = vadd.f32 %v1954, %v2051
        %s2058 = scalar_lea.vmem [#allocation9], 56
        %v2059 = vld [vmem:[%s2058] sm:$0xf]
        %v2060 = vld [vmem:[%s2058 + $0x4] sm:$0xf]
        %v2063 = vunpack.c.l.s4 1983009808
        %v2064 = vunpack.c.0.s8 %v2063
        %v2065 = vlaneseq
        %v2066 = vshrl.u32 %v2065, 7
        %v2067 = vsub.s32 %v2064, %v2066
        %v2068 = vrot.slane %v1782, %v2067
        %v2069 = vcombine.high %v2068, %v2068
        %v2071 = vshrl.u32 %v2068, 16
        %v2073 = vrot.slane %v2071, 6
        %v2074 = vshll.u32 %v2068, 16
        %v2076 = vrot.slane %v2074, 7
        %v2077 = vor.u32 %v2073, %v2076
        %v2078 = vrot.slane %v2077, 2
        %v2080 = vshll.u32 %v2069, 16
        %v2082 = vrot.slane %v2080, 7
        %v2083 = vsel %vm750, %v2078, %v2082
        %v2084 = vcombine.low %v1980, %v2083
        %v2086 = vunpack.c.l.s4 1983009808
        %v2087 = vunpack.c.0.s8 %v2086
        %v2088 = vlaneseq
        %v2089 = vshrl.u32 %v2088, 7
        %v2090 = vsub.s32 %v2087, %v2089
        %v2091 = vrot.slane %v2084, %v2090
        %v2092 = vcombine.low %v1893, %v2091
        %v2095 = vunpack.c.l.b16 %v2059
        %v2096 = vunpack.c.l.b16 %v2060
        %v2097 = vpack.c.b16 %v2096, %v2095
        %v2100 = vsel %vm1568, %v2092, 0
        %2102 = vmatprep.subr.bf16.mxu0 0
        %2103 = vmatpush1.bf16.msra.mxu0 %v2097
        %2104 = vmatprep.subr.bf16.mxu0 0
        %2105 = vmatpush1.bf16.msra.mxu0 0
        %2106 = vmatprep.subr.bf16.mxu0 0
        %2107 = vmatpush1.bf16.msra.mxu0 0
        %2108 = vmatprep.subr.bf16.mxu0 0
        %2109 = vmatpush1.bf16.msra.mxu0 0
        %2110 = vmatprep.subr.bf16.mxu0 0
        %2111 = vmatpush1.bf16.msra.mxu0 0
        %2112 = vmatprep.subr.bf16.mxu0 0
        %2113 = vmatpush1.bf16.msra.mxu0 0
        %2114 = vmatprep.subr.bf16.mxu0 0
        %2115 = vmatpush1.bf16.msra.mxu0 0
        %2116 = vmatprep.subr.bf16.mxu0 0
        %2117 = vmatpush1.bf16.msra.mxu0 0
        %2118 = vmatprep.subr.bf16.mxu0 0
        %2119 = vmatpush1.bf16.msra.mxu0 0
        %2120 = vmatprep.subr.bf16.mxu0 0
        %2121 = vmatpush1.bf16.msra.mxu0 0
        %2122 = vmatprep.subr.bf16.mxu0 0
        %2123 = vmatpush1.bf16.msra.mxu0 0
        %2124 = vmatprep.subr.bf16.mxu0 0
        %2125 = vmatpush1.bf16.msra.mxu0 0
        %2126 = vmatprep.subr.bf16.mxu0 0
        %2127 = vmatpush1.bf16.msra.mxu0 0
        %2128 = vmatprep.subr.bf16.mxu0 0
        %2129 = vmatpush1.bf16.msra.mxu0 0
        %2130 = vmatprep.subr.bf16.mxu0 0
        %2131 = vmatpush1.bf16.msra.mxu0 0
        %2132 = vmatprep.subr.bf16.mxu0 0
        %2133 = vmatpush1.bf16.msra.mxu0 0
        %2134 = vmatprep.mubr.bf16.mxu0 0
        %2135 = vmatmul.mubr.bf16.gmra.mrb[0].mxu0 %v2100
        %v2136 = vpop.f32.mrb[0].mxu0
        %v2137 = vadd.f32 0.0, %v2136
        %v2138 = vpop.f32.mrb[0].mxu0
        %v2139 = vpop.f32.mrb[0].mxu0
        %v2140 = vadd.f32 0.0, %v2139
        %v2141 = vpop.f32.mrb[0].mxu0
        %2142 = vdwg.mxu0
        %v2145 = vcombine.high %v2137, %v2137
        %v2146 = vcombine.high %v2140, %v2140
        %v2149 = vadd.f32 %v2054, %v2137
        %v2150 = vadd.f32 %v2055, %v2145
        %v2151 = vadd.f32 %v2056, %v2140
        %v2152 = vadd.f32 %v2057, %v2146
        %v2153 = vld [vmem:[#allocation2] sm:$0x6]
        %v2154 = vld [vmem:[#allocation2 + $0x4] sm:$0x6]
        %v2155 = vld [vmem:[#allocation2 + $0x8] sm:$0x6]
        %v2156 = vld [vmem:[#allocation2 + $0xc] sm:$0x6]
        %v2157 = vld [vmem:[#allocation2 + $0x10] sm:$0x6]
        %v2158 = vld [vmem:[#allocation2 + $0x14] sm:$0x6]
        %s2159 = scalar_lea.vmem [#allocation9], 16
        %v2160 = vld [vmem:[%s2159] sm:$0xf]
        %v2161 = vld [vmem:[%s2159 + $0x4] sm:$0xf]
        %v2167 = vunpack.c.l.s4 1983009808
        %v2168 = vunpack.c.0.s8 %v2167
        %v2169 = vlaneseq
        %v2170 = vshrl.u32 %v2169, 7
        %v2171 = vsub.s32 %v2168, %v2170
        %v2172 = vrot.slane %v2153, %v2171
        %v2173 = vcombine.high %v2172, %v2172
        %v2175 = vunpack.c.l.s4 1983009808
        %v2176 = vunpack.c.0.s8 %v2175
        %v2177 = vlaneseq
        %v2178 = vshrl.u32 %v2177, 7
        %v2179 = vsub.s32 %v2176, %v2178
        %v2180 = vrot.slane %v2154, %v2179
        %v2181 = vcombine.high %v2180, %v2180
        %v2183 = vunpack.c.l.s4 1983009808
        %v2184 = vunpack.c.0.s8 %v2183
        %v2185 = vlaneseq
        %v2186 = vshrl.u32 %v2185, 7
        %v2187 = vsub.s32 %v2184, %v2186
        %v2188 = vrot.slane %v2155, %v2187
        %v2189 = vcombine.high %v2188, %v2188
        %v2191 = vunpack.c.l.s4 1983009808
        %v2192 = vunpack.c.0.s8 %v2191
        %v2193 = vlaneseq
        %v2194 = vshrl.u32 %v2193, 7
        %v2195 = vsub.s32 %v2192, %v2194
        %v2196 = vrot.slane %v2156, %v2195
        %v2197 = vcombine.high %v2196, %v2196
        %v2198 = vrot.slane %v2172, 7
        %v2199 = vrot.slane %v2198, 2
        %v2200 = vrot.slane %v2173, 7
        %v2201 = vsel %vm1157, %v2199, %v2200
        %v2202 = vrot.slane %v2180, 7
        %v2203 = vrot.slane %v2202, 2
        %v2204 = vrot.slane %v2181, 7
        %v2205 = vsel %vm1157, %v2203, %v2204
        %v2206 = vrot.slane %v2188, 7
        %v2207 = vrot.slane %v2206, 2
        %v2208 = vrot.slane %v2189, 7
        %v2209 = vsel %vm1157, %v2207, %v2208
        %v2210 = vrot.slane %v2196, 7
        %v2211 = vrot.slane %v2210, 2
        %v2212 = vrot.slane %v2197, 7
        %v2213 = vsel %vm1157, %v2211, %v2212
        %v2214 = vcombine.low %v2201, %v2205
        %v2215 = vcombine.low %v2209, %v2213
        %v2217 = vunpack.c.l.s4 1983009808
        %v2218 = vunpack.c.0.s8 %v2217
        %v2219 = vlaneseq
        %v2220 = vshrl.u32 %v2219, 7
        %v2221 = vsub.s32 %v2218, %v2220
        %v2222 = vrot.slane %v2214, %v2221
        %v2224 = vunpack.c.l.s4 1983009808
        %v2225 = vunpack.c.0.s8 %v2224
        %v2226 = vlaneseq
        %v2227 = vshrl.u32 %v2226, 7
        %v2228 = vsub.s32 %v2225, %v2227
        %v2229 = vrot.slane %v2215, %v2228
        %v2230 = vcombine.low %v2222, %v2229
        %v2233 = vunpack.c.l.b16 %v2160
        %v2234 = vunpack.c.l.b16 %v2161
        %v2235 = vpack.c.b16 %v2234, %v2233
        %v2238 = vsel %vm1568, %v2230, 0
        %2240 = vmatprep.subr.bf16.mxu0 0
        %2241 = vmatpush1.bf16.msra.mxu0 %v2235
        %2242 = vmatprep.subr.bf16.mxu0 0
        %2243 = vmatpush1.bf16.msra.mxu0 0
        %2244 = vmatprep.subr.bf16.mxu0 0
        %2245 = vmatpush1.bf16.msra.mxu0 0
        %2246 = vmatprep.subr.bf16.mxu0 0
        %2247 = vmatpush1.bf16.msra.mxu0 0
        %2248 = vmatprep.subr.bf16.mxu0 0
        %2249 = vmatpush1.bf16.msra.mxu0 0
        %2250 = vmatprep.subr.bf16.mxu0 0
        %2251 = vmatpush1.bf16.msra.mxu0 0
        %2252 = vmatprep.subr.bf16.mxu0 0
        %2253 = vmatpush1.bf16.msra.mxu0 0
        %2254 = vmatprep.subr.bf16.mxu0 0
        %2255 = vmatpush1.bf16.msra.mxu0 0
        %2256 = vmatprep.subr.bf16.mxu0 0
        %2257 = vmatpush1.bf16.msra.mxu0 0
        %2258 = vmatprep.subr.bf16.mxu0 0
        %2259 = vmatpush1.bf16.msra.mxu0 0
        %2260 = vmatprep.subr.bf16.mxu0 0
        %2261 = vmatpush1.bf16.msra.mxu0 0
        %2262 = vmatprep.subr.bf16.mxu0 0
        %2263 = vmatpush1.bf16.msra.mxu0 0
        %2264 = vmatprep.subr.bf16.mxu0 0
        %2265 = vmatpush1.bf16.msra.mxu0 0
        %2266 = vmatprep.subr.bf16.mxu0 0
        %2267 = vmatpush1.bf16.msra.mxu0 0
        %2268 = vmatprep.subr.bf16.mxu0 0
        %2269 = vmatpush1.bf16.msra.mxu0 0
        %2270 = vmatprep.subr.bf16.mxu0 0
        %2271 = vmatpush1.bf16.msra.mxu0 0
        %2272 = vmatprep.mubr.bf16.mxu0 0
        %2273 = vmatmul.mubr.bf16.gmra.mrb[0].mxu0 %v2238
        %v2274 = vpop.f32.mrb[0].mxu0
        %v2275 = vadd.f32 0.0, %v2274
        %v2276 = vpop.f32.mrb[0].mxu0
        %v2277 = vpop.f32.mrb[0].mxu0
        %v2278 = vadd.f32 0.0, %v2277
        %v2279 = vpop.f32.mrb[0].mxu0
        %2280 = vdwg.mxu0
        %v2283 = vcombine.high %v2275, %v2275
        %v2284 = vcombine.high %v2278, %v2278
        %v2287 = vadd.f32 %v2149, %v2275
        %v2288 = vadd.f32 %v2150, %v2283
        %v2289 = vadd.f32 %v2151, %v2278
        %v2290 = vadd.f32 %v2152, %v2284
        %s2291 = scalar_lea.vmem [#allocation9], 40
        %v2292 = vld [vmem:[%s2291] sm:$0xf]
        %v2293 = vld [vmem:[%s2291 + $0x4] sm:$0xf]
        %v2296 = vunpack.c.l.s4 1983009808
        %v2297 = vunpack.c.0.s8 %v2296
        %v2298 = vlaneseq
        %v2299 = vshrl.u32 %v2298, 7
        %v2300 = vsub.s32 %v2297, %v2299
        %v2301 = vrot.slane %v2157, %v2300
        %v2302 = vcombine.high %v2301, %v2301
        %v2303 = vrot.slane %v2301, 7
        %v2304 = vrot.slane %v2303, 2
        %v2305 = vrot.slane %v2302, 7
        %v2306 = vsel %vm1157, %v2304, %v2305
        %v2307 = vcombine.low %v2205, %v2209
        %v2308 = vcombine.low %v2213, %v2306
        %v2310 = vunpack.c.l.s4 1983009808
        %v2311 = vunpack.c.0.s8 %v2310
        %v2312 = vlaneseq
        %v2313 = vshrl.u32 %v2312, 7
        %v2314 = vsub.s32 %v2311, %v2313
        %v2315 = vrot.slane %v2307, %v2314
        %v2317 = vunpack.c.l.s4 1983009808
        %v2318 = vunpack.c.0.s8 %v2317
        %v2319 = vlaneseq
        %v2320 = vshrl.u32 %v2319, 7
        %v2321 = vsub.s32 %v2318, %v2320
        %v2322 = vrot.slane %v2308, %v2321
        %v2323 = vcombine.low %v2315, %v2322
        %v2326 = vunpack.c.l.b16 %v2292
        %v2327 = vunpack.c.l.b16 %v2293
        %v2328 = vpack.c.b16 %v2327, %v2326
        %v2331 = vsel %vm1568, %v2323, 0
        %2333 = vmatprep.subr.bf16.mxu0 0
        %2334 = vmatpush1.bf16.msra.mxu0 %v2328
        %2335 = vmatprep.subr.bf16.mxu0 0
        %2336 = vmatpush1.bf16.msra.mxu0 0
        %2337 = vmatprep.subr.bf16.mxu0 0
        %2338 = vmatpush1.bf16.msra.mxu0 0
        %2339 = vmatprep.subr.bf16.mxu0 0
        %2340 = vmatpush1.bf16.msra.mxu0 0
        %2341 = vmatprep.subr.bf16.mxu0 0
        %2342 = vmatpush1.bf16.msra.mxu0 0
        %2343 = vmatprep.subr.bf16.mxu0 0
        %2344 = vmatpush1.bf16.msra.mxu0 0
        %2345 = vmatprep.subr.bf16.mxu0 0
        %2346 = vmatpush1.bf16.msra.mxu0 0
        %2347 = vmatprep.subr.bf16.mxu0 0
        %2348 = vmatpush1.bf16.msra.mxu0 0
        %2349 = vmatprep.subr.bf16.mxu0 0
        %2350 = vmatpush1.bf16.msra.mxu0 0
        %2351 = vmatprep.subr.bf16.mxu0 0
        %2352 = vmatpush1.bf16.msra.mxu0 0
        %2353 = vmatprep.subr.bf16.mxu0 0
        %2354 = vmatpush1.bf16.msra.mxu0 0
        %2355 = vmatprep.subr.bf16.mxu0 0
        %2356 = vmatpush1.bf16.msra.mxu0 0
        %2357 = vmatprep.subr.bf16.mxu0 0
        %2358 = vmatpush1.bf16.msra.mxu0 0
        %2359 = vmatprep.subr.bf16.mxu0 0
        %2360 = vmatpush1.bf16.msra.mxu0 0
        %2361 = vmatprep.subr.bf16.mxu0 0
        %2362 = vmatpush1.bf16.msra.mxu0 0
        %2363 = vmatprep.subr.bf16.mxu0 0
        %2364 = vmatpush1.bf16.msra.mxu0 0
        %2365 = vmatprep.mubr.bf16.mxu0 0
        %2366 = vmatmul.mubr.bf16.gmra.mrb[0].mxu0 %v2331
        %v2367 = vpop.f32.mrb[0].mxu0
        %v2368 = vadd.f32 0.0, %v2367
        %v2369 = vpop.f32.mrb[0].mxu0
        %v2370 = vpop.f32.mrb[0].mxu0
        %v2371 = vadd.f32 0.0, %v2370
        %v2372 = vpop.f32.mrb[0].mxu0
        %2373 = vdwg.mxu0
        %v2376 = vcombine.high %v2368, %v2368
        %v2377 = vcombine.high %v2371, %v2371
        %v2380 = vadd.f32 %v2287, %v2368
        %v2381 = vadd.f32 %v2288, %v2376
        %v2382 = vadd.f32 %v2289, %v2371
        %v2383 = vadd.f32 %v2290, %v2377
        %s2384 = scalar_lea.vmem [#allocation9], 64
        %v2385 = vld [vmem:[%s2384] sm:$0xf]
        %v2386 = vld [vmem:[%s2384 + $0x4] sm:$0xf]
        %v2389 = vunpack.c.l.s4 1983009808
        %v2390 = vunpack.c.0.s8 %v2389
        %v2391 = vlaneseq
        %v2392 = vshrl.u32 %v2391, 7
        %v2393 = vsub.s32 %v2390, %v2392
        %v2394 = vrot.slane %v2158, %v2393
        %v2395 = vcombine.high %v2394, %v2394
        %v2396 = vrot.slane %v2394, 7
        %v2397 = vrot.slane %v2396, 2
        %v2398 = vrot.slane %v2395, 7
        %v2399 = vsel %vm1157, %v2397, %v2398
        %v2400 = vcombine.low %v2306, %v2399
        %v2402 = vunpack.c.l.s4 1983009808
        %v2403 = vunpack.c.0.s8 %v2402
        %v2404 = vlaneseq
        %v2405 = vshrl.u32 %v2404, 7
        %v2406 = vsub.s32 %v2403, %v2405
        %v2407 = vrot.slane %v2400, %v2406
        %v2408 = vcombine.low %v2229, %v2407
        %v2411 = vunpack.c.l.b16 %v2385
        %v2412 = vunpack.c.l.b16 %v2386
        %v2413 = vpack.c.b16 %v2412, %v2411
        %v2416 = vsel %vm1568, %v2408, 0
        %2418 = vmatprep.subr.bf16.mxu0 0
        %2419 = vmatpush1.bf16.msra.mxu0 %v2413
        %2420 = vmatprep.subr.bf16.mxu0 0
        %2421 = vmatpush1.bf16.msra.mxu0 0
        %2422 = vmatprep.subr.bf16.mxu0 0
        %2423 = vmatpush1.bf16.msra.mxu0 0
        %2424 = vmatprep.subr.bf16.mxu0 0
        %2425 = vmatpush1.bf16.msra.mxu0 0
        %2426 = vmatprep.subr.bf16.mxu0 0
        %2427 = vmatpush1.bf16.msra.mxu0 0
        %2428 = vmatprep.subr.bf16.mxu0 0
        %2429 = vmatpush1.bf16.msra.mxu0 0
        %2430 = vmatprep.subr.bf16.mxu0 0
        %2431 = vmatpush1.bf16.msra.mxu0 0
        %2432 = vmatprep.subr.bf16.mxu0 0
        %2433 = vmatpush1.bf16.msra.mxu0 0
        %2434 = vmatprep.subr.bf16.mxu0 0
        %2435 = vmatpush1.bf16.msra.mxu0 0
        %2436 = vmatprep.subr.bf16.mxu0 0
        %2437 = vmatpush1.bf16.msra.mxu0 0
        %2438 = vmatprep.subr.bf16.mxu0 0
        %2439 = vmatpush1.bf16.msra.mxu0 0
        %2440 = vmatprep.subr.bf16.mxu0 0
        %2441 = vmatpush1.bf16.msra.mxu0 0
        %2442 = vmatprep.subr.bf16.mxu0 0
        %2443 = vmatpush1.bf16.msra.mxu0 0
        %2444 = vmatprep.subr.bf16.mxu0 0
        %2445 = vmatpush1.bf16.msra.mxu0 0
        %2446 = vmatprep.subr.bf16.mxu0 0
        %2447 = vmatpush1.bf16.msra.mxu0 0
        %2448 = vmatprep.subr.bf16.mxu0 0
        %2449 = vmatpush1.bf16.msra.mxu0 0
        %2450 = vmatprep.mubr.bf16.mxu0 0
        %2451 = vmatmul.mubr.bf16.gmra.mrb[0].mxu0 %v2416
        %v2452 = vpop.f32.mrb[0].mxu0
        %v2453 = vadd.f32 0.0, %v2452
        %v2454 = vpop.f32.mrb[0].mxu0
        %v2455 = vpop.f32.mrb[0].mxu0
        %v2456 = vadd.f32 0.0, %v2455
        %v2457 = vpop.f32.mrb[0].mxu0
        %2458 = vdwg.mxu0
        %v2461 = vcombine.high %v2453, %v2453
        %v2462 = vcombine.high %v2456, %v2456
        %v2465 = vadd.f32 %v2380, %v2453
        %v2466 = vadd.f32 %v2381, %v2461
        %v2467 = vadd.f32 %v2382, %v2456
        %v2468 = vadd.f32 %v2383, %v2462
        %v2469 = vld [vmem:[%s4] sm:$0x1]
        %v2471 = vlaneseq
        %v2472 = vshrl.u32 %v2471, 7
        %v2473 = vsub.s32 0, %v2472
        %v2474 = vrot.slane %v2469, %v2473
        %v2476 = vadd.f32 %v2465, %v2474
        %v2477 = vadd.f32 %v2466, %v2474
        %v2478 = vadd.f32 %v2467, %v2474
        %v2479 = vadd.f32 %v2468, %v2474
        %v2480 = vmax.f32 %v2476, 0.0
        %v2481 = vmax.f32 %v2477, 0.0
        %v2482 = vmax.f32 %v2478, 0.0
        %v2483 = vmax.f32 %v2479, 0.0
        %v2484 = vpack.c.bf16 %v2480, %v2480
        %v2485 = vpack.c.bf16 %v2481, %v2481
        %v2486 = vpack.c.bf16 %v2482, %v2482
        %v2487 = vpack.c.bf16 %v2483, %v2483
        %vm2488 = vcmask 254976
        %2489 = vst.msk [vmem:[%s311] sm:$0x3] %vm2488, %v2484
        %2490 = vst.msk [vmem:[%s311 + $0x2] sm:$0x3] %vm2488, %v2485
        %2491 = vst.msk [vmem:[%s311 + $0x4] sm:$0x3] %vm2488, %v2486
        %2492 = vst.msk [vmem:[%s311 + $0x6] sm:$0x3] %vm2488, %v2487
        %s2493 = sand.u32 %s149, 1
        %s2494 = scalar_lea.sflag [#allocation5], %s2493
        %s2495 = sand.u32 %s149, 1
        %s2496 = smul.addr %s2495, 8
        %s2497 = scalar_lea.vmem [#allocation11], %s2496
        // Predicated region
        $region57: #{tpu_custom_call.1} parent=39 // pred_check
          %p2498 = pneg %p159
        $region58: #{tpu_custom_call.1} parent=39 // pred_check_branch
          %2500 = sbr.rel (%p2498) target = $region60
        $region59: #{tpu_custom_call.1} parent=39 // pred_region
          %s2502 = ssub.s32 128, 128
          %2503 = vsyncadd %s2494, %s2502
          %s2504 = smul.addr %s26, 4
          %s2505 = smul.addr %s2504, 32
          %s2506 = scalar_lea.hbm %s5, %s2505
          %s2507 = sshll.u32 %s2497, 4
          %s2508 = int_to_ptr.vmem [resolvable:$true] %s2507
          %2513 = dma.vmem_to_hbm [thread:$0]  %s2508, 128, %s2506, %s2494, 32, 32, 2
        $region60: #{tpu_custom_call.1} parent=39 // pred_fallthru
          _
      $region40: #{tpu_custom_call.1} parent=5 // pred_fallthru
        _
      %p2514 = scmp.le.s32.totalorder 2, %s21
      // Predicated region
      $region61: #{tpu_custom_call.1} parent=5 // pred_check
        %p2515 = pneg %p2514
      $region62: #{tpu_custom_call.1} parent=5 // pred_check_branch
        %2517 = sbr.rel (%p2515) target = $region64
      $region63: #{tpu_custom_call.1} parent=5 // pred_region
        %s2518 = ssub.s32 %s21, 2
        // Predicated region
        $region65: #{tpu_custom_call.1} parent=63 // pred_check
          %p2519 = pneg %p165
        $region66: #{tpu_custom_call.1} parent=63 // pred_check_branch
          %2521 = sbr.rel (%p2519) target = $region68
        $region67: #{tpu_custom_call.1} parent=63 // pred_region
          %s2522 = sand.u32 %s150, 1
          %s2523 = scalar_lea.sflag [#allocation5], %s2522
          %s2524 = sand.u32 %s150, 1
          %s2525 = smul.addr %s2524, 8
          %s2526 = scalar_lea.vmem [#allocation11], %s2525
          %2527 = dma.done %s2523, 128
        $region68: #{tpu_custom_call.1} parent=63 // pred_fallthru
          _
      $region64: #{tpu_custom_call.1} parent=5 // pred_fallthru
        _
    $region6: #{tpu_custom_call.1} parent=1 // loop_footer
      %s25 = sadd.s32 1, %s21
    $region7: #{tpu_custom_call.1} parent=1 // loop_footer_branch
      %20 = sbr.rel target = $region3
    $region8: #{tpu_custom_call.1} parent=1 // loop_exit
      _
    %2528 = vsyncpa [#allocation4], 1
    %s2529 = scalar_lea.sflag [#allocation4], 1
    %2530 = vsyncpa %s2529, 1
    %2531 = vsyncpa [#allocation7], 1
    %s2532 = scalar_lea.sflag [#allocation7], 1
    %2533 = vsyncpa %s2532, 1
    %2534 = vsyncpa [#allocation10], 1
    %2535 = vsyncpa [#allocation5], 1
    %s2536 = scalar_lea.sflag [#allocation5], 1
    %2537 = vsyncpa %s2536, 1

</llo_original>
